<compile_context>
chip_gen: v7x
topology: tpu7x:2x2x1
jax: 0.10.0
libtpu: 0.0.40
codegen_flags: <defaults>
</compile_context>

<pallas_src>
import functools

import jax
import jax.numpy as jnp
from jax.experimental import pallas as pl
from jax.experimental.pallas import tpu as pltpu

_VPU_MAC_MAX_K = 16  # contractions up to this K use VPU broadcast-MACs, not the MXU


# ----------------------------------------------------------------------------
# Fused kernel
# ----------------------------------------------------------------------------
def _pointwise(w, x, b):
    """y = w @ x + b with w:(Co,K), x:(K,L), b:(Co,1), all f32 -> (Co,L) f32."""
    co, k_dim = w.shape
    l_dim = x.shape[1]
    if k_dim <= _VPU_MAC_MAX_K:
        acc = jnp.zeros((co, l_dim), jnp.float32)
        for k in range(k_dim):
            acc = acc + w[:, k:k + 1] * x[k:k + 1, :]   # lane/sublane broadcasts + FMA
        return acc + b
    return jnp.dot(w, x, preferred_element_type=jnp.float32) + b


def _inverted_residual_kernel(x_ref, *refs, H, W, stride, has_expand, use_res):
    if has_expand:
        (w1_ref, b1_ref, wdw_ref, b2_ref, w3_ref, b3_ref,
         o_ref, hpad_ref) = refs
    else:
        wdw_ref, b2_ref, w3_ref, b3_ref, o_ref, hpad_ref = refs

    HW = H * W
    hidden = wdw_ref.shape[0]
    pad = W + 1                                   # one spatial row (+1) of zero padding

    x = x_ref[0].astype(jnp.float32)              # (Cin, H*W), lanes = flattened H*W

    # ---- 1x1 expand conv + folded-BN bias + ReLU6 (VPU MACs, K = Cin is tiny) ----
    if has_expand:
        h = jnp.clip(_pointwise(w1_ref[...], x, b1_ref[...]), 0.0, 6.0)
    else:
        h = x                                     # hidden_dim == Cin

    # Hidden activation stays in VMEM for the whole block (no HBM round trip).
    # Zero-pad by one row each side of the flattened row-major spatial axis so the
    # 3x3 taps below are plain shifted loads.
    hpad_ref[...] = jnp.zeros_like(hpad_ref)
    hpad_ref[:, pad:pad + HW] = h

    # ---- 3x3 depthwise conv (scale-folded weights) + bias + ReLU6 ----
    j_idx = jax.lax.broadcasted_iota(jnp.int32, (1, HW), 1) % W
    not_left = j_idx >= 1                         # dj == -1 taps invalid at j == 0
    not_right = j_idx <= W - 2                    # dj == +1 taps invalid at j == W-1

    wdw = wdw_ref[...]                            # (hidden, 9)
    acc = jnp.zeros((hidden, HW), jnp.float32)
    for di in (-1, 0, 1):
        for dj in (-1, 0, 1):
            off = pad + di * W + dj
            tap = hpad_ref[:, off:off + HW]       # shifted view of padded hidden act
            if dj == -1:
                tap = jnp.where(not_left, tap, 0.0)
            elif dj == 1:
                tap = jnp.where(not_right, tap, 0.0)
            k = (di + 1) * 3 + (dj + 1)
            acc = acc + tap * wdw[:, k:k + 1]
    hd = jnp.clip(acc + b2_ref[...], 0.0, 6.0)    # (hidden, H*W)

    if stride == 2:
        # Subsample BEFORE the project conv so the projection never runs at full res.
        # TODO(synk): accumulate the strided depthwise directly instead of full-res
        # depthwise + 0/1 selection matmul.
        Ho, Wo = (H - 1) // 2 + 1, (W - 1) // 2 + 1
        p_idx = jax.lax.broadcasted_iota(jnp.int32, (HW, Ho * Wo), 0)
        q_idx = jax.lax.broadcasted_iota(jnp.int32, (HW, Ho * Wo), 1)
        sel = 2 * (q_idx // Wo) * W + 2 * (q_idx % Wo)
        pick = (p_idx == sel).astype(jnp.float32)
        hd = jnp.dot(hd, pick, preferred_element_type=jnp.float32)

    # ---- 1x1 project conv + folded-BN bias (+ fused residual) ----
    y = _pointwise(w3_ref[...], hd, b3_ref[...])  # (oup, Ho*Wo)
    if use_res:
        y = y + x
    o_ref[0] = y.astype(o_ref.dtype)


# ----------------------------------------------------------------------------
# Wrapper
# ----------------------------------------------------------------------------
def inverted_residual(x_nchw, p, *, stride, expand_ratio):
    """Forward pass of torchvision's InvertedResidual (inference-mode BN). NCHW I/O."""
    assert stride in (1, 2)
    N, Cin, H, W = x_nchw.shape
    has_expand = expand_ratio != 1
    hidden = p["w_dw"].shape[-1]
    oup = p["w3"].shape[1]
    use_res = (stride == 1) and (Cin == oup)
    Ho = (H - 1) // stride + 1
    Wo = (W - 1) // stride + 1
    HW, HoWo = H * W, Ho * Wo
    f32 = jnp.float32

    # Fold BN scales into the conv weights (keeps only the bias add in-kernel).
    wdw_s = jnp.transpose((p["w_dw"] * p["s2"]).reshape(9, hidden)).astype(f32)  # (hidden,9)
    b2 = p["b2"].reshape(hidden, 1).astype(f32)
    w3p = jnp.transpose(p["w3"] * p["s3"]).astype(f32)                            # (oup,hidden)
    b3 = p["b3"].reshape(oup, 1).astype(f32)

    x3 = x_nchw.reshape(N, Cin, HW)   # free reshape: NCHW kept, spatial flattened to lanes

    in_specs = [pl.BlockSpec((1, Cin, HW), lambda b: (b, 0, 0))]
    args = [x3]
    if has_expand:
        w1e = jnp.transpose(p["w1"] * p["s1"]).astype(f32)                        # (hidden,Cin)
        b1 = p["b1"].reshape(hidden, 1).astype(f32)
        in_specs += [pl.BlockSpec((hidden, Cin), lambda b: (0, 0)),
                     pl.BlockSpec((hidden, 1), lambda b: (0, 0))]
        args += [w1e, b1]
    in_specs += [pl.BlockSpec((hidden, 9), lambda b: (0, 0)),
                 pl.BlockSpec((hidden, 1), lambda b: (0, 0)),
                 pl.BlockSpec((oup, hidden), lambda b: (0, 0)),
                 pl.BlockSpec((oup, 1), lambda b: (0, 0))]
    args += [wdw_s, b2, w3p, b3]

    kern = functools.partial(_inverted_residual_kernel, H=H, W=W, stride=stride,
                             has_expand=has_expand, use_res=use_res)

    y = pl.pallas_call(
        kern,
        out_shape=jax.ShapeDtypeStruct((N, oup, HoWo), x_nchw.dtype),
        grid=(N,),
        in_specs=in_specs,
        out_specs=pl.BlockSpec((1, oup, HoWo), lambda b: (b, 0, 0)),
        scratch_shapes=[pltpu.VMEM((hidden, HW + 2 * (W + 1)), jnp.float32)],
        compiler_params=pltpu.CompilerParams(
            dimension_semantics=("parallel",),
            vmem_limit_bytes=32 * 1024 * 1024),
    )(*args)
    return y.reshape(N, oup, Ho, Wo)


# ----------------------------------------------------------------------------
# Parameter init (deterministic, synthetic) + pure-JAX reference for validation
# ----------------------------------------------------------------------------
def fold_bn(gamma, beta, mean, var, eps=1e-5):
    scale = gamma / jnp.sqrt(var + eps)
    bias = beta - mean * scale
    return scale, bias


def make_params(key, inp, oup, expand_ratio):
    hidden = int(round(inp * expand_ratio))
    ks = jax.random.split(key, 15)

    def bn(k0, k1, k2, k3, c):
        gamma = 0.5 + jax.random.uniform(k0, (c,), jnp.float32)
        beta = 0.1 * jax.random.normal(k1, (c,), jnp.float32)
        mean = 0.1 * jax.random.normal(k2, (c,), jnp.float32)
        var = 0.5 + jax.random.uniform(k3, (c,), jnp.float32)
        return fold_bn(gamma, beta, mean, var)

    p = {}
    p["w1"] = 0.2 * jax.random.normal(ks[0], (inp, hidden), jnp.float32)
    p["s1"], p["b1"] = bn(ks[1], ks[2], ks[3], ks[4], hidden)
    p["w_dw"] = 0.2 * jax.random.normal(ks[5], (3, 3, hidden), jnp.float32)
    p["s2"], p["b2"] = bn(ks[6], ks[7], ks[8], ks[9], hidden)
    p["w3"] = 0.2 * jax.random.normal(ks[10], (hidden, oup), jnp.float32)
    p["s3"], p["b3"] = bn(ks[11], ks[12], ks[13], ks[14], oup)
    return p


def reference(x_nchw, p, *, stride, expand_ratio):
    hi = jax.lax.Precision.HIGHEST
    x = jnp.transpose(x_nchw, (0, 2, 3, 1))
    h = x
    if expand_ratio != 1:
        h = jnp.einsum("nhwc,cd->nhwd", x, p["w1"], precision=hi) * p["s1"] + p["b1"]
        h = jnp.clip(h, 0.0, 6.0)
    N, H, W, C = h.shape
    hp = jnp.pad(h, ((0, 0), (1, 1), (1, 1), (0, 0)))
    acc = jnp.zeros_like(h)
    for di in range(3):
        for dj in range(3):
            acc = acc + hp[:, di:di + H, dj:dj + W, :] * p["w_dw"][di, dj]
    if stride == 2:
        acc = acc[:, ::2, ::2, :]
    h = jnp.clip(acc * p["s2"] + p["b2"], 0.0, 6.0)
    y = jnp.einsum("nhwc,cd->nhwd", h, p["w3"], precision=hi) * p["s3"] + p["b3"]
    if stride == 1 and x.shape[-1] == y.shape[-1]:
        y = y + x
    return jnp.transpose(y, (0, 3, 1, 2))


# ----------------------------------------------------------------------------
if __name__ == "__main__":
    key = jax.random.PRNGKey(0)
    k_x, k_p = jax.random.split(key)

    # InvertedResidual(inp=4, oup=4, stride=1, expand_ratio=4) -> hidden_dim=16,
    # use_res_connect=True.
    inp, oup, stride, expand_ratio = 4, 4, 1, 4
    N, H, W = 2, 16, 16

    x = jax.random.normal(k_x, (N, inp, H, W), jnp.float32)   # NCHW, like PyTorch
    params = make_params(k_p, inp, oup, expand_ratio)

    out = inverted_residual(x, params, stride=stride, expand_ratio=expand_ratio)
    out = jax.block_until_ready(out)

    ref = reference(x, params, stride=stride, expand_ratio=expand_ratio)
    assert out.shape == (N, oup, H, W), out.shape
    assert jnp.allclose(out, ref, rtol=1e-4, atol=1e-4), float(
        jnp.max(jnp.abs(out - ref)))

    print("KERNEL_OK")
</pallas_src>

<mosaic_0001>
module attributes {stable_mosaic.version = 11 : i64} {
  func.func @_inverted_residual_kernel(%arg0: i32, %arg1: memref<1x4x256xf32, #tpu.memory_space<vmem>>, %arg2: memref<16x4xf32, #tpu.memory_space<vmem>>, %arg3: memref<16x1xf32, #tpu.memory_space<vmem>>, %arg4: memref<16x9xf32, #tpu.memory_space<vmem>>, %arg5: memref<16x1xf32, #tpu.memory_space<vmem>>, %arg6: memref<4x16xf32, #tpu.memory_space<vmem>>, %arg7: memref<4x1xf32, #tpu.memory_space<vmem>>, %arg8: memref<1x4x256xf32, #tpu.memory_space<vmem>>, %arg9: memref<16x290xf32, #tpu.memory_space<vmem>>) attributes {dimension_semantics = [#tpu.dimension_semantics<parallel>], iteration_bounds = array<i64: 2>, scalar_prefetch = 0 : i64, scratch_operands = 1 : i64, tpu.core_type = #tpu.core_type<tc>, window_params = [{transform_indices = @transform_0, window_bounds = array<i64: 1, 4, 256>}, {pipeline_mode = #tpu.pipeline_mode<synchronous>, transform_indices = @transform_1, window_bounds = array<i64: 16, 4>}, {pipeline_mode = #tpu.pipeline_mode<synchronous>, transform_indices = @transform_2, window_bounds = array<i64: 16, 1>}, {pipeline_mode = #tpu.pipeline_mode<synchronous>, transform_indices = @transform_3, window_bounds = array<i64: 16, 9>}, {pipeline_mode = #tpu.pipeline_mode<synchronous>, transform_indices = @transform_4, window_bounds = array<i64: 16, 1>}, {pipeline_mode = #tpu.pipeline_mode<synchronous>, transform_indices = @transform_5, window_bounds = array<i64: 4, 16>}, {pipeline_mode = #tpu.pipeline_mode<synchronous>, transform_indices = @transform_6, window_bounds = array<i64: 4, 1>}, {transform_indices = @transform_7, window_bounds = array<i64: 1, 4, 256>}]} {
    %c0 = arith.constant 0 : index
    %c0_0 = arith.constant 0 : index
    %c0_1 = arith.constant 0 : index
    %0 = vector.load %arg1[%c0, %c0_0, %c0_1] : memref<1x4x256xf32, #tpu.memory_space<vmem>>, vector<1x4x256xf32>
    %1 = vector.shape_cast %0 : vector<1x4x256xf32> to vector<4x256xf32>
    %c0_2 = arith.constant 0 : index
    %c0_3 = arith.constant 0 : index
    %2 = vector.load %arg2[%c0_2, %c0_3] : memref<16x4xf32, #tpu.memory_space<vmem>>, vector<16x4xf32>
    %c0_4 = arith.constant 0 : index
    %c0_5 = arith.constant 0 : index
    %3 = vector.load %arg3[%c0_4, %c0_5] : memref<16x1xf32, #tpu.memory_space<vmem>>, vector<16x1xf32>
    %cst = arith.constant 0.000000e+00 : f32
    %4 = vector.broadcast %cst : f32 to vector<16x256xf32>
    %5 = vector.extract_strided_slice %2 {offsets = [0, 0], sizes = [16, 1], strides = [1, 1]} : vector<16x4xf32> to vector<16x1xf32>
    %6 = vector.extract_strided_slice %1 {offsets = [0, 0], sizes = [1, 256], strides = [1, 1]} : vector<4x256xf32> to vector<1x256xf32>
    %7 = vector.broadcast %5 : vector<16x1xf32> to vector<16x256xf32>
    %8 = vector.broadcast %6 : vector<1x256xf32> to vector<16x256xf32>
    %9 = arith.mulf %7, %8 : vector<16x256xf32>
    %10 = arith.addf %4, %9 : vector<16x256xf32>
    %11 = vector.extract_strided_slice %2 {offsets = [0, 1], sizes = [16, 1], strides = [1, 1]} : vector<16x4xf32> to vector<16x1xf32>
    %12 = vector.extract_strided_slice %1 {offsets = [1, 0], sizes = [1, 256], strides = [1, 1]} : vector<4x256xf32> to vector<1x256xf32>
    %13 = vector.broadcast %11 : vector<16x1xf32> to vector<16x256xf32>
    %14 = vector.broadcast %12 : vector<1x256xf32> to vector<16x256xf32>
    %15 = arith.mulf %13, %14 : vector<16x256xf32>
    %16 = arith.addf %10, %15 : vector<16x256xf32>
    %17 = vector.extract_strided_slice %2 {offsets = [0, 2], sizes = [16, 1], strides = [1, 1]} : vector<16x4xf32> to vector<16x1xf32>
    %18 = vector.extract_strided_slice %1 {offsets = [2, 0], sizes = [1, 256], strides = [1, 1]} : vector<4x256xf32> to vector<1x256xf32>
    %19 = vector.broadcast %17 : vector<16x1xf32> to vector<16x256xf32>
    %20 = vector.broadcast %18 : vector<1x256xf32> to vector<16x256xf32>
    %21 = arith.mulf %19, %20 : vector<16x256xf32>
    %22 = arith.addf %16, %21 : vector<16x256xf32>
    %23 = vector.extract_strided_slice %2 {offsets = [0, 3], sizes = [16, 1], strides = [1, 1]} : vector<16x4xf32> to vector<16x1xf32>
    %24 = vector.extract_strided_slice %1 {offsets = [3, 0], sizes = [1, 256], strides = [1, 1]} : vector<4x256xf32> to vector<1x256xf32>
    %25 = vector.broadcast %23 : vector<16x1xf32> to vector<16x256xf32>
    %26 = vector.broadcast %24 : vector<1x256xf32> to vector<16x256xf32>
    %27 = arith.mulf %25, %26 : vector<16x256xf32>
    %28 = arith.addf %22, %27 : vector<16x256xf32>
    %29 = vector.broadcast %3 : vector<16x1xf32> to vector<16x256xf32>
    %30 = arith.addf %28, %29 : vector<16x256xf32>
    %cst_6 = arith.constant 0.000000e+00 : f32
    %cst_7 = arith.constant 6.000000e+00 : f32
    %31 = vector.broadcast %cst_6 : f32 to vector<16x256xf32>
    %32 = arith.maximumf %31, %30 : vector<16x256xf32>
    %33 = vector.broadcast %cst_7 : f32 to vector<16x256xf32>
    %34 = arith.minimumf %33, %32 : vector<16x256xf32>
    %cst_8 = arith.constant 0.000000e+00 : f32
    %35 = vector.broadcast %cst_8 : f32 to vector<16x290xf32>
    %c0_9 = arith.constant 0 : index
    %c0_10 = arith.constant 0 : index
    %36 = vector.load %arg9[%c0_9, %c0_10] : memref<16x290xf32, #tpu.memory_space<vmem>>, vector<16x290xf32>
    tpu.vector_store %arg9[%c0_9, %c0_10], %35 {strides = array<i32>} : memref<16x290xf32, #tpu.memory_space<vmem>>, vector<16x290xf32>,
    %c0_11 = arith.constant 0 : index
    %c17 = arith.constant 17 : index
    %37 = vector.load %arg9[%c0_11, %c17] : memref<16x290xf32, #tpu.memory_space<vmem>>, vector<16x256xf32>
    tpu.vector_store %arg9[%c0_11, %c17], %34 {strides = array<i32>} : memref<16x290xf32, #tpu.memory_space<vmem>>, vector<16x256xf32>,
    %38 = tpu.iota {dimensions = array<i32: 1>} : vector<1x256xi32>
    %c16_i32 = arith.constant 16 : i32
    %c0_i32 = arith.constant 0 : i32
    %39 = arith.cmpi eq, %c16_i32, %c0_i32 : i32
    %c1_i32 = arith.constant 1 : i32
    %40 = arith.select %39, %c1_i32, %c16_i32 : i32
    %41 = vector.broadcast %40 : i32 to vector<1x256xi32>
    %42 = arith.remsi %38, %41 : vector<1x256xi32>
    %c0_i32_12 = arith.constant 0 : i32
    %43 = vector.broadcast %c0_i32_12 : i32 to vector<1x256xi32>
    %44 = arith.cmpi ne, %42, %43 : vector<1x256xi32>
    %c0_i32_13 = arith.constant 0 : i32
    %45 = vector.broadcast %c0_i32_13 : i32 to vector<1x256xi32>
    %46 = arith.cmpi slt, %42, %45 : vector<1x256xi32>
    %c0_i32_14 = arith.constant 0 : i32
    %47 = arith.cmpi slt, %40, %c0_i32_14 : i32
    %48 = vector.broadcast %47 : i1 to vector<1x256xi1>
    %49 = vector.broadcast %48 : vector<1x256xi1> to vector<1x256xi1>
    %50 = arith.xori %46, %49 : vector<1x256xi1>
    %51 = arith.andi %50, %44 : vector<1x256xi1>
    %52 = vector.broadcast %40 : i32 to vector<1x256xi32>
    %53 = arith.addi %42, %52 : vector<1x256xi32>
    %54 = arith.select %51, %53, %42 : vector<1x256xi1>, vector<1x256xi32>
    %c1_i32_15 = arith.constant 1 : i32
    %55 = vector.broadcast %c1_i32_15 : i32 to vector<1x256xi32>
    %56 = arith.cmpi sge, %54, %55 : vector<1x256xi32>
    %c14_i32 = arith.constant 14 : i32
    %57 = vector.broadcast %c14_i32 : i32 to vector<1x256xi32>
    %58 = arith.cmpi sle, %54, %57 : vector<1x256xi32>
    %c0_16 = arith.constant 0 : index
    %c0_17 = arith.constant 0 : index
    %59 = vector.load %arg4[%c0_16, %c0_17] : memref<16x9xf32, #tpu.memory_space<vmem>>, vector<16x9xf32>
    %cst_18 = arith.constant 0.000000e+00 : f32
    %60 = vector.broadcast %cst_18 : f32 to vector<16x256xf32>
    %c0_19 = arith.constant 0 : index
    %c0_20 = arith.constant 0 : index
    %61 = vector.load %arg9[%c0_19, %c0_20] : memref<16x290xf32, #tpu.memory_space<vmem>>, vector<16x256xf32>
    %cst_21 = arith.constant 0.000000e+00 : f32
    %62 = vector.shape_cast %56 : vector<1x256xi1> to vector<1x256xi1>
    %63 = vector.broadcast %62 : vector<1x256xi1> to vector<16x256xi1>
    %64 = vector.broadcast %cst_21 : f32 to vector<16x256xf32>
    %65 = arith.select %63, %61, %64 : vector<16x256xi1>, vector<16x256xf32>
    %66 = vector.extract_strided_slice %59 {offsets = [0, 0], sizes = [16, 1], strides = [1, 1]} : vector<16x9xf32> to vector<16x1xf32>
    %67 = vector.broadcast %66 : vector<16x1xf32> to vector<16x256xf32>
    %68 = arith.mulf %65, %67 : vector<16x256xf32>
    %69 = arith.addf %60, %68 : vector<16x256xf32>
    %c0_22 = arith.constant 0 : index
    %c1 = arith.constant 1 : index
    %70 = vector.load %arg9[%c0_22, %c1] : memref<16x290xf32, #tpu.memory_space<vmem>>, vector<16x256xf32>
    %71 = vector.extract_strided_slice %59 {offsets = [0, 1], sizes = [16, 1], strides = [1, 1]} : vector<16x9xf32> to vector<16x1xf32>
    %72 = vector.broadcast %71 : vector<16x1xf32> to vector<16x256xf32>
    %73 = arith.mulf %70, %72 : vector<16x256xf32>
    %74 = arith.addf %69, %73 : vector<16x256xf32>
    %c0_23 = arith.constant 0 : index
    %c2 = arith.constant 2 : index
    %75 = vector.load %arg9[%c0_23, %c2] : memref<16x290xf32, #tpu.memory_space<vmem>>, vector<16x256xf32>
    %cst_24 = arith.constant 0.000000e+00 : f32
    %76 = vector.shape_cast %58 : vector<1x256xi1> to vector<1x256xi1>
    %77 = vector.broadcast %76 : vector<1x256xi1> to vector<16x256xi1>
    %78 = vector.broadcast %cst_24 : f32 to vector<16x256xf32>
    %79 = arith.select %77, %75, %78 : vector<16x256xi1>, vector<16x256xf32>
    %80 = vector.extract_strided_slice %59 {offsets = [0, 2], sizes = [16, 1], strides = [1, 1]} : vector<16x9xf32> to vector<16x1xf32>
    %81 = vector.broadcast %80 : vector<16x1xf32> to vector<16x256xf32>
    %82 = arith.mulf %79, %81 : vector<16x256xf32>
    %83 = arith.addf %74, %82 : vector<16x256xf32>
    %c0_25 = arith.constant 0 : index
    %c16 = arith.constant 16 : index
    %84 = vector.load %arg9[%c0_25, %c16] : memref<16x290xf32, #tpu.memory_space<vmem>>, vector<16x256xf32>
    %cst_26 = arith.constant 0.000000e+00 : f32
    %85 = vector.shape_cast %56 : vector<1x256xi1> to vector<1x256xi1>
    %86 = vector.broadcast %85 : vector<1x256xi1> to vector<16x256xi1>
    %87 = vector.broadcast %cst_26 : f32 to vector<16x256xf32>
    %88 = arith.select %86, %84, %87 : vector<16x256xi1>, vector<16x256xf32>
    %89 = vector.extract_strided_slice %59 {offsets = [0, 3], sizes = [16, 1], strides = [1, 1]} : vector<16x9xf32> to vector<16x1xf32>
    %90 = vector.broadcast %89 : vector<16x1xf32> to vector<16x256xf32>
    %91 = arith.mulf %88, %90 : vector<16x256xf32>
    %92 = arith.addf %83, %91 : vector<16x256xf32>
    %c0_27 = arith.constant 0 : index
    %c17_28 = arith.constant 17 : index
    %93 = vector.load %arg9[%c0_27, %c17_28] : memref<16x290xf32, #tpu.memory_space<vmem>>, vector<16x256xf32>
    %94 = vector.extract_strided_slice %59 {offsets = [0, 4], sizes = [16, 1], strides = [1, 1]} : vector<16x9xf32> to vector<16x1xf32>
    %95 = vector.broadcast %94 : vector<16x1xf32> to vector<16x256xf32>
    %96 = arith.mulf %93, %95 : vector<16x256xf32>
    %97 = arith.addf %92, %96 : vector<16x256xf32>
    %c0_29 = arith.constant 0 : index
    %c18 = arith.constant 18 : index
    %98 = vector.load %arg9[%c0_29, %c18] : memref<16x290xf32, #tpu.memory_space<vmem>>, vector<16x256xf32>
    %cst_30 = arith.constant 0.000000e+00 : f32
    %99 = vector.shape_cast %58 : vector<1x256xi1> to vector<1x256xi1>
    %100 = vector.broadcast %99 : vector<1x256xi1> to vector<16x256xi1>
    %101 = vector.broadcast %cst_30 : f32 to vector<16x256xf32>
    %102 = arith.select %100, %98, %101 : vector<16x256xi1>, vector<16x256xf32>
    %103 = vector.extract_strided_slice %59 {offsets = [0, 5], sizes = [16, 1], strides = [1, 1]} : vector<16x9xf32> to vector<16x1xf32>
    %104 = vector.broadcast %103 : vector<16x1xf32> to vector<16x256xf32>
    %105 = arith.mulf %102, %104 : vector<16x256xf32>
    %106 = arith.addf %97, %105 : vector<16x256xf32>
    %c0_31 = arith.constant 0 : index
    %c32 = arith.constant 32 : index
    %107 = vector.load %arg9[%c0_31, %c32] : memref<16x290xf32, #tpu.memory_space<vmem>>, vector<16x256xf32>
    %cst_32 = arith.constant 0.000000e+00 : f32
    %108 = vector.shape_cast %56 : vector<1x256xi1> to vector<1x256xi1>
    %109 = vector.broadcast %108 : vector<1x256xi1> to vector<16x256xi1>
    %110 = vector.broadcast %cst_32 : f32 to vector<16x256xf32>
    %111 = arith.select %109, %107, %110 : vector<16x256xi1>, vector<16x256xf32>
    %112 = vector.extract_strided_slice %59 {offsets = [0, 6], sizes = [16, 1], strides = [1, 1]} : vector<16x9xf32> to vector<16x1xf32>
    %113 = vector.broadcast %112 : vector<16x1xf32> to vector<16x256xf32>
    %114 = arith.mulf %111, %113 : vector<16x256xf32>
    %115 = arith.addf %106, %114 : vector<16x256xf32>
    %c0_33 = arith.constant 0 : index
    %c33 = arith.constant 33 : index
    %116 = vector.load %arg9[%c0_33, %c33] : memref<16x290xf32, #tpu.memory_space<vmem>>, vector<16x256xf32>
    %117 = vector.extract_strided_slice %59 {offsets = [0, 7], sizes = [16, 1], strides = [1, 1]} : vector<16x9xf32> to vector<16x1xf32>
    %118 = vector.broadcast %117 : vector<16x1xf32> to vector<16x256xf32>
    %119 = arith.mulf %116, %118 : vector<16x256xf32>
    %120 = arith.addf %115, %119 : vector<16x256xf32>
    %c0_34 = arith.constant 0 : index
    %c34 = arith.constant 34 : index
    %121 = vector.load %arg9[%c0_34, %c34] : memref<16x290xf32, #tpu.memory_space<vmem>>, vector<16x256xf32>
    %cst_35 = arith.constant 0.000000e+00 : f32
    %122 = vector.shape_cast %58 : vector<1x256xi1> to vector<1x256xi1>
    %123 = vector.broadcast %122 : vector<1x256xi1> to vector<16x256xi1>
    %124 = vector.broadcast %cst_35 : f32 to vector<16x256xf32>
    %125 = arith.select %123, %121, %124 : vector<16x256xi1>, vector<16x256xf32>
    %126 = vector.extract_strided_slice %59 {offsets = [0, 8], sizes = [16, 1], strides = [1, 1]} : vector<16x9xf32> to vector<16x1xf32>
    %127 = vector.broadcast %126 : vector<16x1xf32> to vector<16x256xf32>
    %128 = arith.mulf %125, %127 : vector<16x256xf32>
    %129 = arith.addf %120, %128 : vector<16x256xf32>
    %c0_36 = arith.constant 0 : index
    %c0_37 = arith.constant 0 : index
    %130 = vector.load %arg5[%c0_36, %c0_37] : memref<16x1xf32, #tpu.memory_space<vmem>>, vector<16x1xf32>
    %131 = vector.broadcast %130 : vector<16x1xf32> to vector<16x256xf32>
    %132 = arith.addf %129, %131 : vector<16x256xf32>
    %cst_38 = arith.constant 0.000000e+00 : f32
    %cst_39 = arith.constant 6.000000e+00 : f32
    %133 = vector.broadcast %cst_38 : f32 to vector<16x256xf32>
    %134 = arith.maximumf %133, %132 : vector<16x256xf32>
    %135 = vector.broadcast %cst_39 : f32 to vector<16x256xf32>
    %136 = arith.minimumf %135, %134 : vector<16x256xf32>
    %c0_40 = arith.constant 0 : index
    %c0_41 = arith.constant 0 : index
    %137 = vector.load %arg6[%c0_40, %c0_41] : memref<4x16xf32, #tpu.memory_space<vmem>>, vector<4x16xf32>
    %c0_42 = arith.constant 0 : index
    %c0_43 = arith.constant 0 : index
    %138 = vector.load %arg7[%c0_42, %c0_43] : memref<4x1xf32, #tpu.memory_space<vmem>>, vector<4x1xf32>
    %cst_44 = arith.constant 0.000000e+00 : f32
    %139 = vector.broadcast %cst_44 : f32 to vector<4x256xf32>
    %140 = vector.extract_strided_slice %137 {offsets = [0, 0], sizes = [4, 1], strides = [1, 1]} : vector<4x16xf32> to vector<4x1xf32>
    %141 = vector.extract_strided_slice %136 {offsets = [0, 0], sizes = [1, 256], strides = [1, 1]} : vector<16x256xf32> to vector<1x256xf32>
    %142 = vector.broadcast %140 : vector<4x1xf32> to vector<4x256xf32>
    %143 = vector.broadcast %141 : vector<1x256xf32> to vector<4x256xf32>
    %144 = arith.mulf %142, %143 : vector<4x256xf32>
    %145 = arith.addf %139, %144 : vector<4x256xf32>
    %146 = vector.extract_strided_slice %137 {offsets = [0, 1], sizes = [4, 1], strides = [1, 1]} : vector<4x16xf32> to vector<4x1xf32>
    %147 = vector.extract_strided_slice %136 {offsets = [1, 0], sizes = [1, 256], strides = [1, 1]} : vector<16x256xf32> to vector<1x256xf32>
    %148 = vector.broadcast %146 : vector<4x1xf32> to vector<4x256xf32>
    %149 = vector.broadcast %147 : vector<1x256xf32> to vector<4x256xf32>
    %150 = arith.mulf %148, %149 : vector<4x256xf32>
    %151 = arith.addf %145, %150 : vector<4x256xf32>
    %152 = vector.extract_strided_slice %137 {offsets = [0, 2], sizes = [4, 1], strides = [1, 1]} : vector<4x16xf32> to vector<4x1xf32>
    %153 = vector.extract_strided_slice %136 {offsets = [2, 0], sizes = [1, 256], strides = [1, 1]} : vector<16x256xf32> to vector<1x256xf32>
    %154 = vector.broadcast %152 : vector<4x1xf32> to vector<4x256xf32>
    %155 = vector.broadcast %153 : vector<1x256xf32> to vector<4x256xf32>
    %156 = arith.mulf %154, %155 : vector<4x256xf32>
    %157 = arith.addf %151, %156 : vector<4x256xf32>
    %158 = vector.extract_strided_slice %137 {offsets = [0, 3], sizes = [4, 1], strides = [1, 1]} : vector<4x16xf32> to vector<4x1xf32>
    %159 = vector.extract_strided_slice %136 {offsets = [3, 0], sizes = [1, 256], strides = [1, 1]} : vector<16x256xf32> to vector<1x256xf32>
    %160 = vector.broadcast %158 : vector<4x1xf32> to vector<4x256xf32>
    %161 = vector.broadcast %159 : vector<1x256xf32> to vector<4x256xf32>
    %162 = arith.mulf %160, %161 : vector<4x256xf32>
    %163 = arith.addf %157, %162 : vector<4x256xf32>
    %164 = vector.extract_strided_slice %137 {offsets = [0, 4], sizes = [4, 1], strides = [1, 1]} : vector<4x16xf32> to vector<4x1xf32>
    %165 = vector.extract_strided_slice %136 {offsets = [4, 0], sizes = [1, 256], strides = [1, 1]} : vector<16x256xf32> to vector<1x256xf32>
    %166 = vector.broadcast %164 : vector<4x1xf32> to vector<4x256xf32>
    %167 = vector.broadcast %165 : vector<1x256xf32> to vector<4x256xf32>
    %168 = arith.mulf %166, %167 : vector<4x256xf32>
    %169 = arith.addf %163, %168 : vector<4x256xf32>
    %170 = vector.extract_strided_slice %137 {offsets = [0, 5], sizes = [4, 1], strides = [1, 1]} : vector<4x16xf32> to vector<4x1xf32>
    %171 = vector.extract_strided_slice %136 {offsets = [5, 0], sizes = [1, 256], strides = [1, 1]} : vector<16x256xf32> to vector<1x256xf32>
    %172 = vector.broadcast %170 : vector<4x1xf32> to vector<4x256xf32>
    %173 = vector.broadcast %171 : vector<1x256xf32> to vector<4x256xf32>
    %174 = arith.mulf %172, %173 : vector<4x256xf32>
    %175 = arith.addf %169, %174 : vector<4x256xf32>
    %176 = vector.extract_strided_slice %137 {offsets = [0, 6], sizes = [4, 1], strides = [1, 1]} : vector<4x16xf32> to vector<4x1xf32>
    %177 = vector.extract_strided_slice %136 {offsets = [6, 0], sizes = [1, 256], strides = [1, 1]} : vector<16x256xf32> to vector<1x256xf32>
    %178 = vector.broadcast %176 : vector<4x1xf32> to vector<4x256xf32>
    %179 = vector.broadcast %177 : vector<1x256xf32> to vector<4x256xf32>
    %180 = arith.mulf %178, %179 : vector<4x256xf32>
    %181 = arith.addf %175, %180 : vector<4x256xf32>
    %182 = vector.extract_strided_slice %137 {offsets = [0, 7], sizes = [4, 1], strides = [1, 1]} : vector<4x16xf32> to vector<4x1xf32>
    %183 = vector.extract_strided_slice %136 {offsets = [7, 0], sizes = [1, 256], strides = [1, 1]} : vector<16x256xf32> to vector<1x256xf32>
    %184 = vector.broadcast %182 : vector<4x1xf32> to vector<4x256xf32>
    %185 = vector.broadcast %183 : vector<1x256xf32> to vector<4x256xf32>
    %186 = arith.mulf %184, %185 : vector<4x256xf32>
    %187 = arith.addf %181, %186 : vector<4x256xf32>
    %188 = vector.extract_strided_slice %137 {offsets = [0, 8], sizes = [4, 1], strides = [1, 1]} : vector<4x16xf32> to vector<4x1xf32>
    %189 = vector.extract_strided_slice %136 {offsets = [8, 0], sizes = [1, 256], strides = [1, 1]} : vector<16x256xf32> to vector<1x256xf32>
    %190 = vector.broadcast %188 : vector<4x1xf32> to vector<4x256xf32>
    %191 = vector.broadcast %189 : vector<1x256xf32> to vector<4x256xf32>
    %192 = arith.mulf %190, %191 : vector<4x256xf32>
    %193 = arith.addf %187, %192 : vector<4x256xf32>
    %194 = vector.extract_strided_slice %137 {offsets = [0, 9], sizes = [4, 1], strides = [1, 1]} : vector<4x16xf32> to vector<4x1xf32>
    %195 = vector.extract_strided_slice %136 {offsets = [9, 0], sizes = [1, 256], strides = [1, 1]} : vector<16x256xf32> to vector<1x256xf32>
    %196 = vector.broadcast %194 : vector<4x1xf32> to vector<4x256xf32>
    %197 = vector.broadcast %195 : vector<1x256xf32> to vector<4x256xf32>
    %198 = arith.mulf %196, %197 : vector<4x256xf32>
    %199 = arith.addf %193, %198 : vector<4x256xf32>
    %200 = vector.extract_strided_slice %137 {offsets = [0, 10], sizes = [4, 1], strides = [1, 1]} : vector<4x16xf32> to vector<4x1xf32>
    %201 = vector.extract_strided_slice %136 {offsets = [10, 0], sizes = [1, 256], strides = [1, 1]} : vector<16x256xf32> to vector<1x256xf32>
    %202 = vector.broadcast %200 : vector<4x1xf32> to vector<4x256xf32>
    %203 = vector.broadcast %201 : vector<1x256xf32> to vector<4x256xf32>
    %204 = arith.mulf %202, %203 : vector<4x256xf32>
    %205 = arith.addf %199, %204 : vector<4x256xf32>
    %206 = vector.extract_strided_slice %137 {offsets = [0, 11], sizes = [4, 1], strides = [1, 1]} : vector<4x16xf32> to vector<4x1xf32>
    %207 = vector.extract_strided_slice %136 {offsets = [11, 0], sizes = [1, 256], strides = [1, 1]} : vector<16x256xf32> to vector<1x256xf32>
    %208 = vector.broadcast %206 : vector<4x1xf32> to vector<4x256xf32>
    %209 = vector.broadcast %207 : vector<1x256xf32> to vector<4x256xf32>
    %210 = arith.mulf %208, %209 : vector<4x256xf32>
    %211 = arith.addf %205, %210 : vector<4x256xf32>
    %212 = vector.extract_strided_slice %137 {offsets = [0, 12], sizes = [4, 1], strides = [1, 1]} : vector<4x16xf32> to vector<4x1xf32>
    %213 = vector.extract_strided_slice %136 {offsets = [12, 0], sizes = [1, 256], strides = [1, 1]} : vector<16x256xf32> to vector<1x256xf32>
    %214 = vector.broadcast %212 : vector<4x1xf32> to vector<4x256xf32>
    %215 = vector.broadcast %213 : vector<1x256xf32> to vector<4x256xf32>
    %216 = arith.mulf %214, %215 : vector<4x256xf32>
    %217 = arith.addf %211, %216 : vector<4x256xf32>
    %218 = vector.extract_strided_slice %137 {offsets = [0, 13], sizes = [4, 1], strides = [1, 1]} : vector<4x16xf32> to vector<4x1xf32>
    %219 = vector.extract_strided_slice %136 {offsets = [13, 0], sizes = [1, 256], strides = [1, 1]} : vector<16x256xf32> to vector<1x256xf32>
    %220 = vector.broadcast %218 : vector<4x1xf32> to vector<4x256xf32>
    %221 = vector.broadcast %219 : vector<1x256xf32> to vector<4x256xf32>
    %222 = arith.mulf %220, %221 : vector<4x256xf32>
    %223 = arith.addf %217, %222 : vector<4x256xf32>
    %224 = vector.extract_strided_slice %137 {offsets = [0, 14], sizes = [4, 1], strides = [1, 1]} : vector<4x16xf32> to vector<4x1xf32>
    %225 = vector.extract_strided_slice %136 {offsets = [14, 0], sizes = [1, 256], strides = [1, 1]} : vector<16x256xf32> to vector<1x256xf32>
    %226 = vector.broadcast %224 : vector<4x1xf32> to vector<4x256xf32>
    %227 = vector.broadcast %225 : vector<1x256xf32> to vector<4x256xf32>
    %228 = arith.mulf %226, %227 : vector<4x256xf32>
    %229 = arith.addf %223, %228 : vector<4x256xf32>
    %230 = vector.extract_strided_slice %137 {offsets = [0, 15], sizes = [4, 1], strides = [1, 1]} : vector<4x16xf32> to vector<4x1xf32>
    %231 = vector.extract_strided_slice %136 {offsets = [15, 0], sizes = [1, 256], strides = [1, 1]} : vector<16x256xf32> to vector<1x256xf32>
    %232 = vector.broadcast %230 : vector<4x1xf32> to vector<4x256xf32>
    %233 = vector.broadcast %231 : vector<1x256xf32> to vector<4x256xf32>
    %234 = arith.mulf %232, %233 : vector<4x256xf32>
    %235 = arith.addf %229, %234 : vector<4x256xf32>
    %236 = vector.broadcast %138 : vector<4x1xf32> to vector<4x256xf32>
    %237 = arith.addf %235, %236 : vector<4x256xf32>
    %238 = arith.addf %237, %1 : vector<4x256xf32>
    %c0_45 = arith.constant 0 : index
    %c0_46 = arith.constant 0 : index
    %c0_47 = arith.constant 0 : index
    %239 = vector.load %arg8[%c0_45, %c0_46, %c0_47] : memref<1x4x256xf32, #tpu.memory_space<vmem>>, vector<1x4x256xf32>
    %240 = vector.shape_cast %239 : vector<1x4x256xf32> to vector<4x256xf32>
    %241 = vector.shape_cast %238 : vector<4x256xf32> to vector<1x4x256xf32>
    tpu.vector_store %arg8[%c0_45, %c0_46, %c0_47], %241 {strides = array<i32>} : memref<1x4x256xf32, #tpu.memory_space<vmem>>, vector<1x4x256xf32>,
    return
  }
  func.func @transform_0(%arg0: i32) -> (i32, i32, i32) {
    %c0_i32 = arith.constant 0 : i32
    %c0_i32_0 = arith.constant 0 : i32
    %c0_i32_1 = arith.constant 0 : i32
    return %arg0, %c0_i32, %c0_i32_0 : i32, i32, i32
  }
  func.func @transform_1(%arg0: i32) -> (i32, i32) {
    %c0_i32 = arith.constant 0 : i32
    %c0_i32_0 = arith.constant 0 : i32
    %c0_i32_1 = arith.constant 0 : i32
    return %c0_i32, %c0_i32_0 : i32, i32
  }
  func.func @transform_2(%arg0: i32) -> (i32, i32) {
    %c0_i32 = arith.constant 0 : i32
    %c0_i32_0 = arith.constant 0 : i32
    %c0_i32_1 = arith.constant 0 : i32
    return %c0_i32, %c0_i32_0 : i32, i32
  }
  func.func @transform_3(%arg0: i32) -> (i32, i32) {
    %c0_i32 = arith.constant 0 : i32
    %c0_i32_0 = arith.constant 0 : i32
    %c0_i32_1 = arith.constant 0 : i32
    return %c0_i32, %c0_i32_0 : i32, i32
  }
  func.func @transform_4(%arg0: i32) -> (i32, i32) {
    %c0_i32 = arith.constant 0 : i32
    %c0_i32_0 = arith.constant 0 : i32
    %c0_i32_1 = arith.constant 0 : i32
    return %c0_i32, %c0_i32_0 : i32, i32
  }
  func.func @transform_5(%arg0: i32) -> (i32, i32) {
    %c0_i32 = arith.constant 0 : i32
    %c0_i32_0 = arith.constant 0 : i32
    %c0_i32_1 = arith.constant 0 : i32
    return %c0_i32, %c0_i32_0 : i32, i32
  }
  func.func @transform_6(%arg0: i32) -> (i32, i32) {
    %c0_i32 = arith.constant 0 : i32
    %c0_i32_0 = arith.constant 0 : i32
    %c0_i32_1 = arith.constant 0 : i32
    return %c0_i32, %c0_i32_0 : i32, i32
  }
  func.func @transform_7(%arg0: i32) -> (i32, i32, i32) {
    %c0_i32 = arith.constant 0 : i32
    %c0_i32_0 = arith.constant 0 : i32
    %c0_i32_1 = arith.constant 0 : i32
    return %arg0, %c0_i32, %c0_i32_0 : i32, i32, i32
  }
}

</mosaic_0001>

<llo_original>
// kernel: tpu_custom_call.1
$region0: #{tpu_custom_call.1}
  #allocation0 [shape = 'u32[]', space=smem, size = 0x4, offset = 0x4, fixed_abs, tag = 'smem constant byte address 0x4 - core index']
  #allocation1 [shape = 'u32[144,128]{1,0:T(1,128)}', space=vmem, size = 0x12000, scoped, tag = 'internal scratch']
  #allocation2 [shape = 'f32[16,290]{1,0:T(8,128)}', space=vmem, size = 0x6000, scoped, tag = 'scratch operand']
  %s0 = inlined_call_operand.vmem [shape: f32[2,4,256], index: 0, kind: input, shape index: {}]
  %s1 = inlined_call_operand.vmem [shape: f32[16,4], index: 1, kind: input, shape index: {}]
  %s2 = inlined_call_operand.vmem [shape: f32[16,1], index: 2, kind: input, shape index: {}]
  %s3 = inlined_call_operand.vmem [shape: f32[16,9], index: 3, kind: input, shape index: {}]
  %s4 = inlined_call_operand.vmem [shape: f32[16,1], index: 4, kind: input, shape index: {}]
  %s5 = inlined_call_operand.vmem [shape: f32[4,16], index: 5, kind: input, shape index: {}]
  %s6 = inlined_call_operand.vmem [shape: f32[4,1], index: 6, kind: input, shape index: {}]
  %s7 = inlined_call_operand.hbm [shape: f32[2,4,256], index: 7, kind: output, shape index: {}]
  %s8 = sld [smem:[#allocation0]]
  $region61: #{tpu_custom_call.1} parent=0
    _
  %s10 = ssub.s32 1, %s8
  %s11 = scalar_select 0, %s10, %s8
  $region1: #{tpu_custom_call.1} parent=0
    #allocation3 [shape = 'u8[8192]{0}', space=vmem, size = 0x2000, scoped, tag = 'output window, operand 0']
    #allocation4 [shape = 's32[2]{0}', space=sflag, size = 0x8, scoped, tag = 'scoped memory for tpu_custom_call.1']
    %12 = vsyncpa [#allocation4], 0
    %s13 = scalar_lea.sflag [#allocation4], 1
    %14 = vsyncpa %s13, 0
    loop: start=0, step=1, limit=4
    $region2: #{tpu_custom_call.1} parent=1 // loop_pre_header
      _
    $region3: #{tpu_custom_call.1} parent=1 // loop_header
      %s16 = sphi 0, %s20
      %p17 = scmp.ge.s32.totalorder %s16, 4
      %s26 = sphi 0, %s28
      %s29 = sphi 0, %s26
      %s30 = sphi 0, %s29
      %s46 = sphi 0, %s30
      %s50 = sphi 0, %s50
      %s52 = sphi 0, %s50
      %s53 = sphi 0, %s52
      %s67 = sphi 0, %s53
      %s71 = sphi 0, %s71
      %s73 = sphi 0, %s71
      %s74 = sphi 0, %s73
      %s88 = sphi 0, %s74
      %s92 = sphi 0, %s92
      %s94 = sphi 0, %s92
      %s95 = sphi 0, %s94
      %s109 = sphi 0, %s95
      %s113 = sphi 0, %s113
      %s115 = sphi 0, %s113
      %s116 = sphi 0, %s115
      %s130 = sphi 0, %s116
      %s134 = sphi 0, %s134
      %s136 = sphi 0, %s134
      %s137 = sphi 0, %s136
      %s151 = sphi 0, %s137
      %s155 = sphi 0, %s155
      %s157 = sphi 0, %s155
      %s158 = sphi 0, %s157
      %s172 = sphi 0, %s158
      %s178 = sphi 0, %s180
      %s181 = sphi 0, %s178
      %s182 = sphi 0, %s181
      %s198 = sphi 0, %s182
    $region4: #{tpu_custom_call.1} parent=1 // loop_header_branch
      %19 = sbr.rel (%p17) target = $region8
    $region5: #{tpu_custom_call.1} parent=1 // loop_body
      %s21 = ssub.s32 %s16, 1
      %s22 = ssub.s32 %s16, 2
      %s23 = sadd.s32 %s16, 1
      %s24 = ssub.s32 %s16, %s23
      %p25 = scmp.eq.s32.totalorder %s24, 0
      %s27 = sadd.s32 %s26, 1
      %s28 = scalar_select %p25, %s26, %s27
      %p31 = pneg %p25
      %p32 = scmp.eq.s32.totalorder %s16, 1
      %p33 = por %p31, %p32
      %p34 = scmp.ne.s32.totalorder %s26, %s29
      %p35 = scmp.eq.s32.totalorder %s16, 0
      %p36 = por %p34, %p35
      %p37 = scmp.ne.s32.totalorder %s26, %s29
      %p38 = scmp.eq.s32.totalorder %s21, 1
      %p39 = por %p37, %p38
      %p40 = scmp.ne.s32.totalorder %s29, %s30
      %p41 = scmp.eq.s32.totalorder %s21, 0
      %p42 = por %p40, %p41
      %p43 = scmp.ne.s32.totalorder %s29, %s30
      %p44 = scmp.eq.s32.totalorder %s22, 1
      %p45 = por %p43, %p44
      %p47 = scmp.ne.s32.totalorder %s30, %s46
      %p48 = scmp.eq.s32.totalorder %s22, 0
      %p49 = por %p47, %p48
      %s51 = sadd.s32 %s50, 1
      %p54 = scmp.eq.s32.totalorder %s16, 1
      %p55 = scmp.ne.s32.totalorder %s50, %s52
      %p56 = scmp.eq.s32.totalorder %s16, 0
      %p57 = por %p55, %p56
      %p58 = scmp.ne.s32.totalorder %s50, %s52
      %p59 = scmp.eq.s32.totalorder %s21, 1
      %p60 = por %p58, %p59
      %p61 = scmp.ne.s32.totalorder %s52, %s53
      %p62 = scmp.eq.s32.totalorder %s21, 0
      %p63 = por %p61, %p62
      %p64 = scmp.ne.s32.totalorder %s52, %s53
      %p65 = scmp.eq.s32.totalorder %s22, 1
      %p66 = por %p64, %p65
      %p68 = scmp.ne.s32.totalorder %s53, %s67
      %p69 = scmp.eq.s32.totalorder %s22, 0
      %p70 = por %p68, %p69
      %s72 = sadd.s32 %s71, 1
      %p75 = scmp.eq.s32.totalorder %s16, 1
      %p76 = scmp.ne.s32.totalorder %s71, %s73
      %p77 = scmp.eq.s32.totalorder %s16, 0
      %p78 = por %p76, %p77
      %p79 = scmp.ne.s32.totalorder %s71, %s73
      %p80 = scmp.eq.s32.totalorder %s21, 1
      %p81 = por %p79, %p80
      %p82 = scmp.ne.s32.totalorder %s73, %s74
      %p83 = scmp.eq.s32.totalorder %s21, 0
      %p84 = por %p82, %p83
      %p85 = scmp.ne.s32.totalorder %s73, %s74
      %p86 = scmp.eq.s32.totalorder %s22, 1
      %p87 = por %p85, %p86
      %p89 = scmp.ne.s32.totalorder %s74, %s88
      %p90 = scmp.eq.s32.totalorder %s22, 0
      %p91 = por %p89, %p90
      %s93 = sadd.s32 %s92, 1
      %p96 = scmp.eq.s32.totalorder %s16, 1
      %p97 = scmp.ne.s32.totalorder %s92, %s94
      %p98 = scmp.eq.s32.totalorder %s16, 0
      %p99 = por %p97, %p98
      %p100 = scmp.ne.s32.totalorder %s92, %s94
      %p101 = scmp.eq.s32.totalorder %s21, 1
      %p102 = por %p100, %p101
      %p103 = scmp.ne.s32.totalorder %s94, %s95
      %p104 = scmp.eq.s32.totalorder %s21, 0
      %p105 = por %p103, %p104
      %p106 = scmp.ne.s32.totalorder %s94, %s95
      %p107 = scmp.eq.s32.totalorder %s22, 1
      %p108 = por %p106, %p107
      %p110 = scmp.ne.s32.totalorder %s95, %s109
      %p111 = scmp.eq.s32.totalorder %s22, 0
      %p112 = por %p110, %p111
      %s114 = sadd.s32 %s113, 1
      %p117 = scmp.eq.s32.totalorder %s16, 1
      %p118 = scmp.ne.s32.totalorder %s113, %s115
      %p119 = scmp.eq.s32.totalorder %s16, 0
      %p120 = por %p118, %p119
      %p121 = scmp.ne.s32.totalorder %s113, %s115
      %p122 = scmp.eq.s32.totalorder %s21, 1
      %p123 = por %p121, %p122
      %p124 = scmp.ne.s32.totalorder %s115, %s116
      %p125 = scmp.eq.s32.totalorder %s21, 0
      %p126 = por %p124, %p125
      %p127 = scmp.ne.s32.totalorder %s115, %s116
      %p128 = scmp.eq.s32.totalorder %s22, 1
      %p129 = por %p127, %p128
      %p131 = scmp.ne.s32.totalorder %s116, %s130
      %p132 = scmp.eq.s32.totalorder %s22, 0
      %p133 = por %p131, %p132
      %s135 = sadd.s32 %s134, 1
      %p138 = scmp.eq.s32.totalorder %s16, 1
      %p139 = scmp.ne.s32.totalorder %s134, %s136
      %p140 = scmp.eq.s32.totalorder %s16, 0
      %p141 = por %p139, %p140
      %p142 = scmp.ne.s32.totalorder %s134, %s136
      %p143 = scmp.eq.s32.totalorder %s21, 1
      %p144 = por %p142, %p143
      %p145 = scmp.ne.s32.totalorder %s136, %s137
      %p146 = scmp.eq.s32.totalorder %s21, 0
      %p147 = por %p145, %p146
      %p148 = scmp.ne.s32.totalorder %s136, %s137
      %p149 = scmp.eq.s32.totalorder %s22, 1
      %p150 = por %p148, %p149
      %p152 = scmp.ne.s32.totalorder %s137, %s151
      %p153 = scmp.eq.s32.totalorder %s22, 0
      %p154 = por %p152, %p153
      %s156 = sadd.s32 %s155, 1
      %p159 = scmp.eq.s32.totalorder %s16, 1
      %p160 = scmp.ne.s32.totalorder %s155, %s157
      %p161 = scmp.eq.s32.totalorder %s16, 0
      %p162 = por %p160, %p161
      %p163 = scmp.ne.s32.totalorder %s155, %s157
      %p164 = scmp.eq.s32.totalorder %s21, 1
      %p165 = por %p163, %p164
      %p166 = scmp.ne.s32.totalorder %s157, %s158
      %p167 = scmp.eq.s32.totalorder %s21, 0
      %p168 = por %p166, %p167
      %p169 = scmp.ne.s32.totalorder %s157, %s158
      %p170 = scmp.eq.s32.totalorder %s22, 1
      %p171 = por %p169, %p170
      %p173 = scmp.ne.s32.totalorder %s158, %s172
      %p174 = scmp.eq.s32.totalorder %s22, 0
      %p175 = por %p173, %p174
      %s176 = ssub.s32 %s16, %s23
      %p177 = scmp.eq.s32.totalorder %s176, 0
      %s179 = sadd.s32 %s178, 1
      %s180 = scalar_select %p177, %s178, %s179
      %p183 = pneg %p177
      %p184 = scmp.eq.s32.totalorder %s16, 1
      %p185 = por %p183, %p184
      %p186 = scmp.ne.s32.totalorder %s178, %s181
      %p187 = scmp.eq.s32.totalorder %s16, 0
      %p188 = por %p186, %p187
      %p189 = scmp.ne.s32.totalorder %s178, %s181
      %p190 = scmp.eq.s32.totalorder %s21, 1
      %p191 = por %p189, %p190
      %p192 = scmp.ne.s32.totalorder %s181, %s182
      %p193 = scmp.eq.s32.totalorder %s21, 0
      %p194 = por %p192, %p193
      %p195 = scmp.ne.s32.totalorder %s181, %s182
      %p196 = scmp.eq.s32.totalorder %s22, 1
      %p197 = por %p195, %p196
      %p199 = scmp.ne.s32.totalorder %s182, %s198
      %p200 = scmp.eq.s32.totalorder %s22, 0
      %p201 = por %p199, %p200
      %p202 = scmp.le.s32.totalorder 1, %s16
      %p203 = scmp.lt.s32.totalorder %s16, 3
      %p204 = pnand %p202, %p203
      %p205 = pneg %p204
      // Predicated region
      $region9: #{tpu_custom_call.1} parent=5 // pred_check
        _
      $region10: #{tpu_custom_call.1} parent=5 // pred_check_branch
        %207 = sbr.rel (%p204) target = $region12
      $region11: #{tpu_custom_call.1} parent=5 // pred_region
        %s208 = ssub.s32 %s16, 1
        // Predicated region
        $region13: #{tpu_custom_call.1} parent=11 // pred_check
          %p209 = pneg %p63
        $region14: #{tpu_custom_call.1} parent=11 // pred_check_branch
          %211 = sbr.rel (%p209) target = $region16
        $region15: #{tpu_custom_call.1} parent=11 // pred_region
          _
        $region16: #{tpu_custom_call.1} parent=11 // pred_fallthru
          _
        // Predicated region
        $region17: #{tpu_custom_call.1} parent=11 // pred_check
          %p212 = pneg %p84
        $region18: #{tpu_custom_call.1} parent=11 // pred_check_branch
          %214 = sbr.rel (%p212) target = $region20
        $region19: #{tpu_custom_call.1} parent=11 // pred_region
          _
        $region20: #{tpu_custom_call.1} parent=11 // pred_fallthru
          _
        // Predicated region
        $region21: #{tpu_custom_call.1} parent=11 // pred_check
          %p215 = pneg %p105
        $region22: #{tpu_custom_call.1} parent=11 // pred_check_branch
          %217 = sbr.rel (%p215) target = $region24
        $region23: #{tpu_custom_call.1} parent=11 // pred_region
          _
        $region24: #{tpu_custom_call.1} parent=11 // pred_fallthru
          _
        // Predicated region
        $region25: #{tpu_custom_call.1} parent=11 // pred_check
          %p218 = pneg %p126
        $region26: #{tpu_custom_call.1} parent=11 // pred_check_branch
          %220 = sbr.rel (%p218) target = $region28
        $region27: #{tpu_custom_call.1} parent=11 // pred_region
          _
        $region28: #{tpu_custom_call.1} parent=11 // pred_fallthru
          _
        // Predicated region
        $region29: #{tpu_custom_call.1} parent=11 // pred_check
          %p221 = pneg %p147
        $region30: #{tpu_custom_call.1} parent=11 // pred_check_branch
          %223 = sbr.rel (%p221) target = $region32
        $region31: #{tpu_custom_call.1} parent=11 // pred_region
          _
        $region32: #{tpu_custom_call.1} parent=11 // pred_fallthru
          _
        // Predicated region
        $region33: #{tpu_custom_call.1} parent=11 // pred_check
          %p224 = pneg %p168
        $region34: #{tpu_custom_call.1} parent=11 // pred_check_branch
          %226 = sbr.rel (%p224) target = $region36
        $region35: #{tpu_custom_call.1} parent=11 // pred_region
          _
        $region36: #{tpu_custom_call.1} parent=11 // pred_fallthru
          _
      $region12: #{tpu_custom_call.1} parent=5 // pred_fallthru
        _
      %p227 = scmp.lt.s32.totalorder %s16, 2
      // Predicated region
      $region37: #{tpu_custom_call.1} parent=5 // pred_check
        %p228 = pneg %p227
      $region38: #{tpu_custom_call.1} parent=5 // pred_check_branch
        %230 = sbr.rel (%p228) target = $region40
      $region39: #{tpu_custom_call.1} parent=5 // pred_region
        // Predicated region
        $region41: #{tpu_custom_call.1} parent=39 // pred_check
          %p231 = pneg %p36
        $region42: #{tpu_custom_call.1} parent=39 // pred_check_branch
          %233 = sbr.rel (%p231) target = $region44
        $region43: #{tpu_custom_call.1} parent=39 // pred_region
          %p234 = scmp.lt.s32.totalorder %s16, 1
          %s235 = scalar_select %p234, %s16, 1
          %s236 = smul.addr %s235, 2
          %s237 = smul.addr %s236, 4
          %s238 = scalar_lea.vmem %s0, %s237
        $region44: #{tpu_custom_call.1} parent=39 // pred_fallthru
          _
      $region40: #{tpu_custom_call.1} parent=5 // pred_fallthru
        _
      %p239 = scmp.le.s32.totalorder 1, %s16
      %p240 = scmp.lt.s32.totalorder %s16, 3
      %p241 = pnand %p239, %p240
      %p242 = pneg %p241
      // Predicated region
      $region45: #{tpu_custom_call.1} parent=5 // pred_check
        _
      $region46: #{tpu_custom_call.1} parent=5 // pred_check_branch
        %244 = sbr.rel (%p241) target = $region48
      $region47: #{tpu_custom_call.1} parent=5 // pred_region
        %s245 = ssub.s32 %s16, 1
        %p246 = scmp.lt.s32.totalorder %s21, 1
        %s247 = scalar_select %p246, %s21, 1
        %s248 = smul.addr %s247, 2
        %s249 = smul.addr %s248, 4
        %s250 = scalar_lea.vmem %s0, %s249
        %p251 = pneg %p42
        %p252 = pneg %p39
        %p253 = pneg %p63
        %p254 = pneg %p60
        %p255 = pneg %p84
        %p256 = pneg %p81
        %p257 = pneg %p105
        %p258 = pneg %p102
        %p259 = pneg %p126
        %p260 = pneg %p123
        %p261 = pneg %p147
        %p262 = pneg %p144
        %p263 = pneg %p168
        %p264 = pneg %p165
        %p265 = pneg %p194
        %p266 = pneg %p191
        %s267 = sand.u32 %s181, 1
        %s268 = scalar_lea.sflag [#allocation4], %s267
        %s269 = sand.u32 %s181, 1
        %s270 = smul.addr %s269, 8
        %s271 = scalar_lea.vmem [#allocation3], %s270
        %p272 = scmp.lt.s32.totalorder %s21, 1
        %s273 = scalar_select %p272, %s21, 1
        %s274 = smul.addr %s273, 2
        %s275 = smul.addr %s274, 4
        %s276 = scalar_lea.vmem %s0, %s275
        %v277 = vld [vmem:[%s276] sm:$0xff]
        %v278 = vld [vmem:[%s1] sm:$0xff]
        %v279 = vld [vmem:[%s1 + $0x8] sm:$0xff]
        %v280 = vld [vmem:[%s2] sm:$0xff]
        %v281 = vld [vmem:[%s2 + $0x8] sm:$0xff]
        %283 = vset.pattern.permute.xlu0 0
        %284 = vperm.xlu0 %283, %v278
        %v285 = vpop.permute.xlu0 %284
        %288 = vset.pattern.permute.xlu0 0
        %289 = vperm.xlu0 %288, %v279
        %v290 = vpop.permute.xlu0 %289
        %v293 = vlaneseq
        %v294 = vshrl.u32 %v293, 7
        %v295 = vsub.s32 0, %v294
        %v296 = vrot.slane %v277, %v295
        %v297 = vlaneseq
        %v298 = vshrl.u32 %v297, 7
        %v299 = vsub.s32 4, %v298
        %v300 = vrot.slane %v277, %v299
        %v303 = vlaneseq
        %v304 = vshrl.u32 %v303, 7
        %v305 = vsub.s32 0, %v304
        %v306 = vrot.slane %v296, %v305
        %v307 = vlaneseq
        %v308 = vshrl.u32 %v307, 7
        %v309 = vsub.s32 0, %v308
        %v310 = vrot.slane %v300, %v309
        %v311 = vmul.f32 %v285, %v306
        %v312 = vmul.f32 %v285, %v310
        %v313 = vmul.f32 %v290, %v306
        %v314 = vmul.f32 %v290, %v310
        %v315 = vadd.f32 %v311, 0.0
        %v316 = vadd.f32 %v312, 0.0
        %v317 = vadd.f32 %v313, 0.0
        %v318 = vadd.f32 %v314, 0.0
        %319 = vset.pattern.permute.xlu0 1
        %320 = vperm.xlu0 %319, %v278
        %v321 = vpop.permute.xlu0 %320
        %323 = vset.pattern.permute.xlu0 1
        %324 = vperm.xlu0 %323, %v279
        %v325 = vpop.permute.xlu0 %324
        %v327 = vlaneseq
        %v328 = vshrl.u32 %v327, 7
        %v329 = vsub.s32 1, %v328
        %v330 = vrot.slane %v277, %v329
        %v331 = vlaneseq
        %v332 = vshrl.u32 %v331, 7
        %v333 = vsub.s32 5, %v332
        %v334 = vrot.slane %v277, %v333
        %v337 = vlaneseq
        %v338 = vshrl.u32 %v337, 7
        %v339 = vsub.s32 1, %v338
        %v340 = vrot.slane %v330, %v339
        %v341 = vlaneseq
        %v342 = vshrl.u32 %v341, 7
        %v343 = vsub.s32 1, %v342
        %v344 = vrot.slane %v334, %v343
        %v345 = vmul.f32 %v321, %v340
        %v346 = vmul.f32 %v321, %v344
        %v347 = vmul.f32 %v325, %v340
        %v348 = vmul.f32 %v325, %v344
        %v349 = vadd.f32 %v315, %v345
        %v350 = vadd.f32 %v316, %v346
        %v351 = vadd.f32 %v317, %v347
        %v352 = vadd.f32 %v318, %v348
        %353 = vset.pattern.permute.xlu0 2
        %354 = vperm.xlu0 %353, %v278
        %v355 = vpop.permute.xlu0 %354
        %357 = vset.pattern.permute.xlu0 2
        %358 = vperm.xlu0 %357, %v279
        %v359 = vpop.permute.xlu0 %358
        %v361 = vlaneseq
        %v362 = vshrl.u32 %v361, 7
        %v363 = vsub.s32 2, %v362
        %v364 = vrot.slane %v277, %v363
        %v365 = vlaneseq
        %v366 = vshrl.u32 %v365, 7
        %v367 = vsub.s32 6, %v366
        %v368 = vrot.slane %v277, %v367
        %v371 = vlaneseq
        %v372 = vshrl.u32 %v371, 7
        %v373 = vsub.s32 2, %v372
        %v374 = vrot.slane %v364, %v373
        %v375 = vlaneseq
        %v376 = vshrl.u32 %v375, 7
        %v377 = vsub.s32 2, %v376
        %v378 = vrot.slane %v368, %v377
        %v379 = vmul.f32 %v355, %v374
        %v380 = vmul.f32 %v355, %v378
        %v381 = vmul.f32 %v359, %v374
        %v382 = vmul.f32 %v359, %v378
        %v383 = vadd.f32 %v349, %v379
        %v384 = vadd.f32 %v350, %v380
        %v385 = vadd.f32 %v351, %v381
        %v386 = vadd.f32 %v352, %v382
        %387 = vset.pattern.permute.xlu0 3
        %388 = vperm.xlu0 %387, %v278
        %v389 = vpop.permute.xlu0 %388
        %391 = vset.pattern.permute.xlu0 3
        %392 = vperm.xlu0 %391, %v279
        %v393 = vpop.permute.xlu0 %392
        %v395 = vlaneseq
        %v396 = vshrl.u32 %v395, 7
        %v397 = vsub.s32 3, %v396
        %v398 = vrot.slane %v277, %v397
        %v399 = vlaneseq
        %v400 = vshrl.u32 %v399, 7
        %v401 = vsub.s32 7, %v400
        %v402 = vrot.slane %v277, %v401
        %v405 = vlaneseq
        %v406 = vshrl.u32 %v405, 7
        %v407 = vsub.s32 3, %v406
        %v408 = vrot.slane %v398, %v407
        %v409 = vlaneseq
        %v410 = vshrl.u32 %v409, 7
        %v411 = vsub.s32 3, %v410
        %v412 = vrot.slane %v402, %v411
        %v413 = vmul.f32 %v389, %v408
        %v414 = vmul.f32 %v389, %v412
        %v415 = vmul.f32 %v393, %v408
        %v416 = vmul.f32 %v393, %v412
        %v417 = vadd.f32 %v383, %v413
        %v418 = vadd.f32 %v384, %v414
        %v419 = vadd.f32 %v385, %v415
        %v420 = vadd.f32 %v386, %v416
        %422 = vset.pattern.permute.xlu0 0
        %423 = vperm.xlu0 %422, %v280
        %v424 = vpop.permute.xlu0 %423
        %427 = vset.pattern.permute.xlu0 0
        %428 = vperm.xlu0 %427, %v281
        %v429 = vpop.permute.xlu0 %428
        %v431 = vadd.f32 %v417, %v424
        %v432 = vadd.f32 %v418, %v424
        %v433 = vadd.f32 %v419, %v429
        %v434 = vadd.f32 %v420, %v429
        %v435 = vmax.f32 %v431, 0.0
        %v436 = vmax.f32 %v432, 0.0
        %v437 = vmax.f32 %v433, 0.0
        %v438 = vmax.f32 %v434, 0.0
        %v439 = vmin.f32 %v435, 6.0
        %v440 = vmin.f32 %v436, 6.0
        %v441 = vmin.f32 %v437, 6.0
        %v442 = vmin.f32 %v438, 6.0
        %443 = vst [vmem:[#allocation2] sm:$0xff] 0.0
        %444 = vst [vmem:[#allocation2 + $0x8] sm:$0xff] 0.0
        %vm445 = vcmask 277504
        %446 = vst.msk [vmem:[#allocation2 + $0x10] sm:$0xff] %vm445, 0.0
        %447 = vst [vmem:[#allocation2 + $0x18] sm:$0xff] 0.0
        %448 = vst [vmem:[#allocation2 + $0x20] sm:$0xff] 0.0
        %449 = vst.msk [vmem:[#allocation2 + $0x28] sm:$0xff] %vm445, 0.0
        %454 = vrot.lane.b32.xlu0 %v439, 17
        %v455 = vpop.permute.xlu0 %454
        %456 = vrot.lane.b32.xlu0 %v440, 17
        %v457 = vpop.permute.xlu0 %456
        %458 = vrot.lane.b32.xlu0 %v441, 17
        %v459 = vpop.permute.xlu0 %458
        %460 = vrot.lane.b32.xlu0 %v442, 17
        %v461 = vpop.permute.xlu0 %460
        %vm462 = vcmask 138240
        %v463 = vsel %vm462, %v455, %v457
        %v464 = vsel %vm462, %v459, %v461
        %vm471 = vcmask 1047688
        %472 = vst.msk [vmem:[#allocation2] sm:$0xff] %vm471, %v455
        %473 = vst [vmem:[#allocation2 + $0x8] sm:$0xff] %v463
        %474 = vst.msk [vmem:[#allocation2 + $0x10] sm:$0xff] %vm462, %v457
        %475 = vst.msk [vmem:[#allocation2 + $0x18] sm:$0xff] %vm471, %v459
        %476 = vst [vmem:[#allocation2 + $0x20] sm:$0xff] %v464
        %477 = vst.msk [vmem:[#allocation2 + $0x28] sm:$0xff] %vm462, %v461
        %v478 = vlaneseq
        %v479 = vand.u32 %v478, 127
        %v480 = vadd.s32 %v479, 128
        %vm481 = vcmp.lt.s32.totalorder %v479, 0
        %v482 = vsub.s32 0, %v479
        %v483 = vsel %vm481, %v482, %v479
        %v484 = vshrl.u32 %v483, 4
        %v485 = vand.u32 %v483, 15
        %v486 = vsub.s32 0, %v485
        %v487 = vsel %vm481, %v486, %v485
        %vm488 = vcmp.lt.s32.totalorder %v480, 0
        %v489 = vsub.s32 0, %v480
        %v490 = vsel %vm488, %v489, %v480
        %v491 = vshrl.u32 %v490, 4
        %v492 = vand.u32 %v490, 15
        %v493 = vsub.s32 0, %v492
        %v494 = vsel %vm488, %v493, %v492
        %vm495 = vcmp.ne.s32.totalorder %v487, 0
        %vm496 = vcmp.ne.s32.totalorder %v494, 0
        %vm497 = vcmp.lt.s32.totalorder %v487, 0
        %vm498 = vcmp.lt.s32.totalorder %v494, 0
        %vm499 = vmand %vm497, %vm495
        %vm500 = vmand %vm498, %vm496
        %v501 = vadd.s32 %v487, 16
        %v502 = vadd.s32 %v494, 16
        %v503 = vsel %vm499, %v501, %v487
        %v504 = vsel %vm500, %v502, %v494
        %vm505 = vcmp.ge.s32.totalorder %v503, 1
        %vm506 = vcmp.ge.s32.totalorder %v504, 1
        %vm507 = vcmp.le.s32.totalorder %v503, 14
        %vm508 = vcmp.le.s32.totalorder %v504, 14
        %v509 = vld [vmem:[%s3] sm:$0xff]
        %v510 = vld [vmem:[%s3 + $0x8] sm:$0xff]
        %v511 = vld [vmem:[#allocation2] sm:$0xff]
        %v512 = vld [vmem:[#allocation2 + $0x8] sm:$0xff]
        %v513 = vld [vmem:[#allocation2 + $0x18] sm:$0xff]
        %v514 = vld [vmem:[#allocation2 + $0x20] sm:$0xff]
        %v515 = vsel %vm505, 1, 0
        %v516 = vsel %vm506, 1, 0
        %vm517 = vcmp.eq.s32.totalorder %v515, 1
        %vm518 = vcmp.eq.s32.totalorder %v516, 1
        %v519 = vsel %vm517, %v511, 0.0
        %v520 = vsel %vm518, %v512, 0.0
        %v521 = vsel %vm517, %v513, 0.0
        %v522 = vsel %vm518, %v514, 0.0
        %524 = vset.pattern.permute.xlu0 0
        %525 = vperm.xlu0 %524, %v509
        %v526 = vpop.permute.xlu0 %525
        %529 = vset.pattern.permute.xlu0 0
        %530 = vperm.xlu0 %529, %v510
        %v531 = vpop.permute.xlu0 %530
        %v533 = vmul.f32 %v519, %v526
        %v534 = vmul.f32 %v520, %v526
        %v535 = vmul.f32 %v521, %v531
        %v536 = vmul.f32 %v522, %v531
        %v537 = vadd.f32 %v533, 0.0
        %v538 = vadd.f32 %v534, 0.0
        %v539 = vadd.f32 %v535, 0.0
        %v540 = vadd.f32 %v536, 0.0
        %v541 = vld [vmem:[#allocation2] sm:$0xff]
        %v542 = vld [vmem:[#allocation2 + $0x8] sm:$0xff]
        %v543 = vld [vmem:[#allocation2 + $0x10] sm:$0xff]
        %v544 = vld [vmem:[#allocation2 + $0x18] sm:$0xff]
        %v545 = vld [vmem:[#allocation2 + $0x20] sm:$0xff]
        %v546 = vld [vmem:[#allocation2 + $0x28] sm:$0xff]
        %547 = vset.pattern.permute.xlu0 1
        %548 = vperm.xlu0 %547, %v509
        %v549 = vpop.permute.xlu0 %548
        %551 = vset.pattern.permute.xlu0 1
        %552 = vperm.xlu0 %551, %v510
        %v553 = vpop.permute.xlu0 %552
        %v555 = vmul.f32 %v541, %v549
        %v556 = vmul.f32 %v542, %v549
        %v557 = vmul.f32 %v543, %v549
        %v558 = vmul.f32 %v544, %v553
        %v559 = vmul.f32 %v545, %v553
        %v560 = vmul.f32 %v546, %v553
        %567 = vrot.lane.b32.xlu0 %v555, 127
        %v568 = vpop.permute.xlu0 %567
        %569 = vrot.lane.b32.xlu0 %v556, 127
        %v570 = vpop.permute.xlu0 %569
        %571 = vrot.lane.b32.xlu0 %v557, 127
        %v572 = vpop.permute.xlu0 %571
        %573 = vrot.lane.b32.xlu0 %v558, 127
        %v574 = vpop.permute.xlu0 %573
        %575 = vrot.lane.b32.xlu0 %v559, 127
        %v576 = vpop.permute.xlu0 %575
        %577 = vrot.lane.b32.xlu0 %v560, 127
        %v578 = vpop.permute.xlu0 %577
        %vm579 = vcmask 1039360
        %v580 = vsel %vm579, %v568, %v570
        %v581 = vsel %vm579, %v570, %v572
        %v582 = vsel %vm579, %v574, %v576
        %v583 = vsel %vm579, %v576, %v578
        %v588 = vadd.f32 %v537, %v580
        %v589 = vadd.f32 %v538, %v581
        %v590 = vadd.f32 %v539, %v582
        %v591 = vadd.f32 %v540, %v583
        %v592 = vsel %vm507, 1, 0
        %v593 = vsel %vm508, 1, 0
        %vm594 = vcmp.eq.s32.totalorder %v592, 1
        %vm595 = vcmp.eq.s32.totalorder %v593, 1
        %602 = vrot.lane.b32.xlu0 %v541, 126
        %v603 = vpop.permute.xlu0 %602
        %604 = vrot.lane.b32.xlu0 %v542, 126
        %v605 = vpop.permute.xlu0 %604
        %606 = vrot.lane.b32.xlu0 %v543, 126
        %v607 = vpop.permute.xlu0 %606
        %608 = vrot.lane.b32.xlu0 %v544, 126
        %v609 = vpop.permute.xlu0 %608
        %610 = vrot.lane.b32.xlu0 %v545, 126
        %v611 = vpop.permute.xlu0 %610
        %612 = vrot.lane.b32.xlu0 %v546, 126
        %v613 = vpop.permute.xlu0 %612
        %vm614 = vcmask 1031168
        %v615 = vsel %vm614, %v603, %v605
        %v616 = vsel %vm614, %v605, %v607
        %v617 = vsel %vm614, %v609, %v611
        %v618 = vsel %vm614, %v611, %v613
        %v623 = vsel %vm594, %v615, 0.0
        %v624 = vsel %vm595, %v616, 0.0
        %v625 = vsel %vm594, %v617, 0.0
        %v626 = vsel %vm595, %v618, 0.0
        %627 = vset.pattern.permute.xlu0 2
        %628 = vperm.xlu0 %627, %v509
        %v629 = vpop.permute.xlu0 %628
        %631 = vset.pattern.permute.xlu0 2
        %632 = vperm.xlu0 %631, %v510
        %v633 = vpop.permute.xlu0 %632
        %v635 = vmul.f32 %v623, %v629
        %v636 = vmul.f32 %v624, %v629
        %v637 = vmul.f32 %v625, %v633
        %v638 = vmul.f32 %v626, %v633
        %v639 = vadd.f32 %v588, %v635
        %v640 = vadd.f32 %v589, %v636
        %v641 = vadd.f32 %v590, %v637
        %v642 = vadd.f32 %v591, %v638
        %643 = vrot.lane.b32.xlu0 %v541, 112
        %v644 = vpop.permute.xlu0 %643
        %645 = vrot.lane.b32.xlu0 %v542, 112
        %v646 = vpop.permute.xlu0 %645
        %647 = vrot.lane.b32.xlu0 %v543, 112
        %v648 = vpop.permute.xlu0 %647
        %649 = vrot.lane.b32.xlu0 %v544, 112
        %v650 = vpop.permute.xlu0 %649
        %651 = vrot.lane.b32.xlu0 %v545, 112
        %v652 = vpop.permute.xlu0 %651
        %653 = vrot.lane.b32.xlu0 %v546, 112
        %v654 = vpop.permute.xlu0 %653
        %vm655 = vcmask 916480
        %v656 = vsel %vm655, %v644, %v646
        %v657 = vsel %vm655, %v646, %v648
        %v658 = vsel %vm655, %v650, %v652
        %v659 = vsel %vm655, %v652, %v654
        %v664 = vsel %vm517, %v656, 0.0
        %v665 = vsel %vm518, %v657, 0.0
        %v666 = vsel %vm517, %v658, 0.0
        %v667 = vsel %vm518, %v659, 0.0
        %668 = vset.pattern.permute.xlu0 3
        %669 = vperm.xlu0 %668, %v509
        %v670 = vpop.permute.xlu0 %669
        %672 = vset.pattern.permute.xlu0 3
        %673 = vperm.xlu0 %672, %v510
        %v674 = vpop.permute.xlu0 %673
        %v676 = vmul.f32 %v664, %v670
        %v677 = vmul.f32 %v665, %v670
        %v678 = vmul.f32 %v666, %v674
        %v679 = vmul.f32 %v667, %v674
        %v680 = vadd.f32 %v639, %v676
        %v681 = vadd.f32 %v640, %v677
        %v682 = vadd.f32 %v641, %v678
        %v683 = vadd.f32 %v642, %v679
        %684 = vset.pattern.permute.xlu0 4
        %685 = vperm.xlu0 %684, %v509
        %v686 = vpop.permute.xlu0 %685
        %688 = vset.pattern.permute.xlu0 4
        %689 = vperm.xlu0 %688, %v510
        %v690 = vpop.permute.xlu0 %689
        %v692 = vmul.f32 %v541, %v686
        %v693 = vmul.f32 %v542, %v686
        %v694 = vmul.f32 %v543, %v686
        %v695 = vmul.f32 %v544, %v690
        %v696 = vmul.f32 %v545, %v690
        %v697 = vmul.f32 %v546, %v690
        %704 = vrot.lane.b32.xlu0 %v692, 111
        %v705 = vpop.permute.xlu0 %704
        %706 = vrot.lane.b32.xlu0 %v693, 111
        %v707 = vpop.permute.xlu0 %706
        %708 = vrot.lane.b32.xlu0 %v694, 111
        %v709 = vpop.permute.xlu0 %708
        %710 = vrot.lane.b32.xlu0 %v695, 111
        %v711 = vpop.permute.xlu0 %710
        %712 = vrot.lane.b32.xlu0 %v696, 111
        %v713 = vpop.permute.xlu0 %712
        %714 = vrot.lane.b32.xlu0 %v697, 111
        %v715 = vpop.permute.xlu0 %714
        %vm716 = vcmask 908288
        %v717 = vsel %vm716, %v705, %v707
        %v718 = vsel %vm716, %v707, %v709
        %v719 = vsel %vm716, %v711, %v713
        %v720 = vsel %vm716, %v713, %v715
        %v725 = vadd.f32 %v680, %v717
        %v726 = vadd.f32 %v681, %v718
        %v727 = vadd.f32 %v682, %v719
        %v728 = vadd.f32 %v683, %v720
        %729 = vrot.lane.b32.xlu0 %v541, 110
        %v730 = vpop.permute.xlu0 %729
        %731 = vrot.lane.b32.xlu0 %v542, 110
        %v732 = vpop.permute.xlu0 %731
        %733 = vrot.lane.b32.xlu0 %v543, 110
        %v734 = vpop.permute.xlu0 %733
        %735 = vrot.lane.b32.xlu0 %v544, 110
        %v736 = vpop.permute.xlu0 %735
        %737 = vrot.lane.b32.xlu0 %v545, 110
        %v738 = vpop.permute.xlu0 %737
        %739 = vrot.lane.b32.xlu0 %v546, 110
        %v740 = vpop.permute.xlu0 %739
        %vm741 = vcmask 900096
        %v742 = vsel %vm741, %v730, %v732
        %v743 = vsel %vm741, %v732, %v734
        %v744 = vsel %vm741, %v736, %v738
        %v745 = vsel %vm741, %v738, %v740
        %v750 = vsel %vm594, %v742, 0.0
        %v751 = vsel %vm595, %v743, 0.0
        %v752 = vsel %vm594, %v744, 0.0
        %v753 = vsel %vm595, %v745, 0.0
        %754 = vset.pattern.permute.xlu0 5
        %755 = vperm.xlu0 %754, %v509
        %v756 = vpop.permute.xlu0 %755
        %758 = vset.pattern.permute.xlu0 5
        %759 = vperm.xlu0 %758, %v510
        %v760 = vpop.permute.xlu0 %759
        %v762 = vmul.f32 %v750, %v756
        %v763 = vmul.f32 %v751, %v756
        %v764 = vmul.f32 %v752, %v760
        %v765 = vmul.f32 %v753, %v760
        %v766 = vadd.f32 %v725, %v762
        %v767 = vadd.f32 %v726, %v763
        %v768 = vadd.f32 %v727, %v764
        %v769 = vadd.f32 %v728, %v765
        %770 = vrot.lane.b32.xlu0 %v541, 96
        %v771 = vpop.permute.xlu0 %770
        %772 = vrot.lane.b32.xlu0 %v542, 96
        %v773 = vpop.permute.xlu0 %772
        %774 = vrot.lane.b32.xlu0 %v543, 96
        %v775 = vpop.permute.xlu0 %774
        %776 = vrot.lane.b32.xlu0 %v544, 96
        %v777 = vpop.permute.xlu0 %776
        %778 = vrot.lane.b32.xlu0 %v545, 96
        %v779 = vpop.permute.xlu0 %778
        %780 = vrot.lane.b32.xlu0 %v546, 96
        %v781 = vpop.permute.xlu0 %780
        %vm782 = vcmask 785408
        %v783 = vsel %vm782, %v771, %v773
        %v784 = vsel %vm782, %v773, %v775
        %v785 = vsel %vm782, %v777, %v779
        %v786 = vsel %vm782, %v779, %v781
        %v791 = vsel %vm517, %v783, 0.0
        %v792 = vsel %vm518, %v784, 0.0
        %v793 = vsel %vm517, %v785, 0.0
        %v794 = vsel %vm518, %v786, 0.0
        %795 = vset.pattern.permute.xlu0 6
        %796 = vperm.xlu0 %795, %v509
        %v797 = vpop.permute.xlu0 %796
        %799 = vset.pattern.permute.xlu0 6
        %800 = vperm.xlu0 %799, %v510
        %v801 = vpop.permute.xlu0 %800
        %v803 = vmul.f32 %v791, %v797
        %v804 = vmul.f32 %v792, %v797
        %v805 = vmul.f32 %v793, %v801
        %v806 = vmul.f32 %v794, %v801
        %v807 = vadd.f32 %v766, %v803
        %v808 = vadd.f32 %v767, %v804
        %v809 = vadd.f32 %v768, %v805
        %v810 = vadd.f32 %v769, %v806
        %811 = vset.pattern.permute.xlu0 7
        %812 = vperm.xlu0 %811, %v509
        %v813 = vpop.permute.xlu0 %812
        %815 = vset.pattern.permute.xlu0 7
        %816 = vperm.xlu0 %815, %v510
        %v817 = vpop.permute.xlu0 %816
        %v819 = vmul.f32 %v541, %v813
        %v820 = vmul.f32 %v542, %v813
        %v821 = vmul.f32 %v543, %v813
        %v822 = vmul.f32 %v544, %v817
        %v823 = vmul.f32 %v545, %v817
        %v824 = vmul.f32 %v546, %v817
        %831 = vrot.lane.b32.xlu0 %v819, 95
        %v832 = vpop.permute.xlu0 %831
        %833 = vrot.lane.b32.xlu0 %v820, 95
        %v834 = vpop.permute.xlu0 %833
        %835 = vrot.lane.b32.xlu0 %v821, 95
        %v836 = vpop.permute.xlu0 %835
        %837 = vrot.lane.b32.xlu0 %v822, 95
        %v838 = vpop.permute.xlu0 %837
        %839 = vrot.lane.b32.xlu0 %v823, 95
        %v840 = vpop.permute.xlu0 %839
        %841 = vrot.lane.b32.xlu0 %v824, 95
        %v842 = vpop.permute.xlu0 %841
        %vm843 = vcmask 777216
        %v844 = vsel %vm843, %v832, %v834
        %v845 = vsel %vm843, %v834, %v836
        %v846 = vsel %vm843, %v838, %v840
        %v847 = vsel %vm843, %v840, %v842
        %v852 = vadd.f32 %v807, %v844
        %v853 = vadd.f32 %v808, %v845
        %v854 = vadd.f32 %v809, %v846
        %v855 = vadd.f32 %v810, %v847
        %856 = vrot.lane.b32.xlu0 %v541, 94
        %v857 = vpop.permute.xlu0 %856
        %858 = vrot.lane.b32.xlu0 %v542, 94
        %v859 = vpop.permute.xlu0 %858
        %860 = vrot.lane.b32.xlu0 %v543, 94
        %v861 = vpop.permute.xlu0 %860
        %862 = vrot.lane.b32.xlu0 %v544, 94
        %v863 = vpop.permute.xlu0 %862
        %864 = vrot.lane.b32.xlu0 %v545, 94
        %v865 = vpop.permute.xlu0 %864
        %866 = vrot.lane.b32.xlu0 %v546, 94
        %v867 = vpop.permute.xlu0 %866
        %vm868 = vcmask 769024
        %v869 = vsel %vm868, %v857, %v859
        %v870 = vsel %vm868, %v859, %v861
        %v871 = vsel %vm868, %v863, %v865
        %v872 = vsel %vm868, %v865, %v867
        %v877 = vsel %vm594, %v869, 0.0
        %v878 = vsel %vm595, %v870, 0.0
        %v879 = vsel %vm594, %v871, 0.0
        %v880 = vsel %vm595, %v872, 0.0
        %881 = vset.pattern.permute.xlu0 8
        %882 = vperm.xlu0 %881, %v509
        %v883 = vpop.permute.xlu0 %882
        %885 = vset.pattern.permute.xlu0 8
        %886 = vperm.xlu0 %885, %v510
        %v887 = vpop.permute.xlu0 %886
        %v889 = vmul.f32 %v877, %v883
        %v890 = vmul.f32 %v878, %v883
        %v891 = vmul.f32 %v879, %v887
        %v892 = vmul.f32 %v880, %v887
        %v893 = vadd.f32 %v852, %v889
        %v894 = vadd.f32 %v853, %v890
        %v895 = vadd.f32 %v854, %v891
        %v896 = vadd.f32 %v855, %v892
        %v897 = vld [vmem:[%s4] sm:$0xff]
        %v898 = vld [vmem:[%s4 + $0x8] sm:$0xff]
        %900 = vset.pattern.permute.xlu0 0
        %901 = vperm.xlu0 %900, %v897
        %v902 = vpop.permute.xlu0 %901
        %905 = vset.pattern.permute.xlu0 0
        %906 = vperm.xlu0 %905, %v898
        %v907 = vpop.permute.xlu0 %906
        %v909 = vadd.f32 %v893, %v902
        %v910 = vadd.f32 %v894, %v902
        %v911 = vadd.f32 %v895, %v907
        %v912 = vadd.f32 %v896, %v907
        %v913 = vmax.f32 %v909, 0.0
        %v914 = vmax.f32 %v910, 0.0
        %v915 = vmax.f32 %v911, 0.0
        %v916 = vmax.f32 %v912, 0.0
        %v917 = vmin.f32 %v913, 6.0
        %v918 = vmin.f32 %v914, 6.0
        %v919 = vmin.f32 %v915, 6.0
        %v920 = vmin.f32 %v916, 6.0
        %v921 = vld [vmem:[%s5] sm:$0xf]
        %v922 = vld [vmem:[%s6] sm:$0xf]
        %924 = vset.pattern.permute.xlu0 0
        %925 = vperm.xlu0 %924, %v921
        %v926 = vpop.permute.xlu0 %925
        %v928 = vlaneseq
        %v929 = vshrl.u32 %v928, 7
        %v930 = vsub.s32 0, %v929
        %v931 = vrot.slane %v917, %v930
        %v932 = vlaneseq
        %v933 = vshrl.u32 %v932, 7
        %v934 = vsub.s32 0, %v933
        %v935 = vrot.slane %v918, %v934
        %v936 = vmul.f32 %v926, %v931
        %v937 = vmul.f32 %v926, %v935
        %v938 = vadd.f32 %v936, 0.0
        %v939 = vadd.f32 %v937, 0.0
        %940 = vset.pattern.permute.xlu0 1
        %941 = vperm.xlu0 %940, %v921
        %v942 = vpop.permute.xlu0 %941
        %v944 = vlaneseq
        %v945 = vshrl.u32 %v944, 7
        %v946 = vsub.s32 1, %v945
        %v947 = vrot.slane %v917, %v946
        %v948 = vlaneseq
        %v949 = vshrl.u32 %v948, 7
        %v950 = vsub.s32 1, %v949
        %v951 = vrot.slane %v918, %v950
        %v952 = vmul.f32 %v942, %v947
        %v953 = vmul.f32 %v942, %v951
        %v954 = vadd.f32 %v938, %v952
        %v955 = vadd.f32 %v939, %v953
        %956 = vset.pattern.permute.xlu0 2
        %957 = vperm.xlu0 %956, %v921
        %v958 = vpop.permute.xlu0 %957
        %v960 = vlaneseq
        %v961 = vshrl.u32 %v960, 7
        %v962 = vsub.s32 2, %v961
        %v963 = vrot.slane %v917, %v962
        %v964 = vlaneseq
        %v965 = vshrl.u32 %v964, 7
        %v966 = vsub.s32 2, %v965
        %v967 = vrot.slane %v918, %v966
        %v968 = vmul.f32 %v958, %v963
        %v969 = vmul.f32 %v958, %v967
        %v970 = vadd.f32 %v954, %v968
        %v971 = vadd.f32 %v955, %v969
        %972 = vset.pattern.permute.xlu0 3
        %973 = vperm.xlu0 %972, %v921
        %v974 = vpop.permute.xlu0 %973
        %v976 = vlaneseq
        %v977 = vshrl.u32 %v976, 7
        %v978 = vsub.s32 3, %v977
        %v979 = vrot.slane %v917, %v978
        %v980 = vlaneseq
        %v981 = vshrl.u32 %v980, 7
        %v982 = vsub.s32 3, %v981
        %v983 = vrot.slane %v918, %v982
        %v984 = vmul.f32 %v974, %v979
        %v985 = vmul.f32 %v974, %v983
        %v986 = vadd.f32 %v970, %v984
        %v987 = vadd.f32 %v971, %v985
        %988 = vset.pattern.permute.xlu0 4
        %989 = vperm.xlu0 %988, %v921
        %v990 = vpop.permute.xlu0 %989
        %v992 = vlaneseq
        %v993 = vshrl.u32 %v992, 7
        %v994 = vsub.s32 4, %v993
        %v995 = vrot.slane %v917, %v994
        %v996 = vlaneseq
        %v997 = vshrl.u32 %v996, 7
        %v998 = vsub.s32 4, %v997
        %v999 = vrot.slane %v918, %v998
        %v1000 = vmul.f32 %v990, %v995
        %v1001 = vmul.f32 %v990, %v999
        %v1002 = vadd.f32 %v986, %v1000
        %v1003 = vadd.f32 %v987, %v1001
        %1004 = vset.pattern.permute.xlu0 5
        %1005 = vperm.xlu0 %1004, %v921
        %v1006 = vpop.permute.xlu0 %1005
        %v1008 = vlaneseq
        %v1009 = vshrl.u32 %v1008, 7
        %v1010 = vsub.s32 5, %v1009
        %v1011 = vrot.slane %v917, %v1010
        %v1012 = vlaneseq
        %v1013 = vshrl.u32 %v1012, 7
        %v1014 = vsub.s32 5, %v1013
        %v1015 = vrot.slane %v918, %v1014
        %v1016 = vmul.f32 %v1006, %v1011
        %v1017 = vmul.f32 %v1006, %v1015
        %v1018 = vadd.f32 %v1002, %v1016
        %v1019 = vadd.f32 %v1003, %v1017
        %1020 = vset.pattern.permute.xlu0 6
        %1021 = vperm.xlu0 %1020, %v921
        %v1022 = vpop.permute.xlu0 %1021
        %v1024 = vlaneseq
        %v1025 = vshrl.u32 %v1024, 7
        %v1026 = vsub.s32 6, %v1025
        %v1027 = vrot.slane %v917, %v1026
        %v1028 = vlaneseq
        %v1029 = vshrl.u32 %v1028, 7
        %v1030 = vsub.s32 6, %v1029
        %v1031 = vrot.slane %v918, %v1030
        %v1032 = vmul.f32 %v1022, %v1027
        %v1033 = vmul.f32 %v1022, %v1031
        %v1034 = vadd.f32 %v1018, %v1032
        %v1035 = vadd.f32 %v1019, %v1033
        %1036 = vset.pattern.permute.xlu0 7
        %1037 = vperm.xlu0 %1036, %v921
        %v1038 = vpop.permute.xlu0 %1037
        %v1040 = vlaneseq
        %v1041 = vshrl.u32 %v1040, 7
        %v1042 = vsub.s32 7, %v1041
        %v1043 = vrot.slane %v917, %v1042
        %v1044 = vlaneseq
        %v1045 = vshrl.u32 %v1044, 7
        %v1046 = vsub.s32 7, %v1045
        %v1047 = vrot.slane %v918, %v1046
        %v1048 = vmul.f32 %v1038, %v1043
        %v1049 = vmul.f32 %v1038, %v1047
        %v1050 = vadd.f32 %v1034, %v1048
        %v1051 = vadd.f32 %v1035, %v1049
        %1052 = vset.pattern.permute.xlu0 8
        %1053 = vperm.xlu0 %1052, %v921
        %v1054 = vpop.permute.xlu0 %1053
        %v1056 = vlaneseq
        %v1057 = vshrl.u32 %v1056, 7
        %v1058 = vsub.s32 0, %v1057
        %v1059 = vrot.slane %v919, %v1058
        %v1060 = vlaneseq
        %v1061 = vshrl.u32 %v1060, 7
        %v1062 = vsub.s32 0, %v1061
        %v1063 = vrot.slane %v920, %v1062
        %v1064 = vmul.f32 %v1054, %v1059
        %v1065 = vmul.f32 %v1054, %v1063
        %v1066 = vadd.f32 %v1050, %v1064
        %v1067 = vadd.f32 %v1051, %v1065
        %1068 = vset.pattern.permute.xlu0 9
        %1069 = vperm.xlu0 %1068, %v921
        %v1070 = vpop.permute.xlu0 %1069
        %v1072 = vlaneseq
        %v1073 = vshrl.u32 %v1072, 7
        %v1074 = vsub.s32 1, %v1073
        %v1075 = vrot.slane %v919, %v1074
        %v1076 = vlaneseq
        %v1077 = vshrl.u32 %v1076, 7
        %v1078 = vsub.s32 1, %v1077
        %v1079 = vrot.slane %v920, %v1078
        %v1080 = vmul.f32 %v1070, %v1075
        %v1081 = vmul.f32 %v1070, %v1079
        %v1082 = vadd.f32 %v1066, %v1080
        %v1083 = vadd.f32 %v1067, %v1081
        %1084 = vset.pattern.permute.xlu0 10
        %1085 = vperm.xlu0 %1084, %v921
        %v1086 = vpop.permute.xlu0 %1085
        %v1088 = vlaneseq
        %v1089 = vshrl.u32 %v1088, 7
        %v1090 = vsub.s32 2, %v1089
        %v1091 = vrot.slane %v919, %v1090
        %v1092 = vlaneseq
        %v1093 = vshrl.u32 %v1092, 7
        %v1094 = vsub.s32 2, %v1093
        %v1095 = vrot.slane %v920, %v1094
        %v1096 = vmul.f32 %v1086, %v1091
        %v1097 = vmul.f32 %v1086, %v1095
        %v1098 = vadd.f32 %v1082, %v1096
        %v1099 = vadd.f32 %v1083, %v1097
        %1100 = vset.pattern.permute.xlu0 11
        %1101 = vperm.xlu0 %1100, %v921
        %v1102 = vpop.permute.xlu0 %1101
        %v1104 = vlaneseq
        %v1105 = vshrl.u32 %v1104, 7
        %v1106 = vsub.s32 3, %v1105
        %v1107 = vrot.slane %v919, %v1106
        %v1108 = vlaneseq
        %v1109 = vshrl.u32 %v1108, 7
        %v1110 = vsub.s32 3, %v1109
        %v1111 = vrot.slane %v920, %v1110
        %v1112 = vmul.f32 %v1102, %v1107
        %v1113 = vmul.f32 %v1102, %v1111
        %v1114 = vadd.f32 %v1098, %v1112
        %v1115 = vadd.f32 %v1099, %v1113
        %1116 = vset.pattern.permute.xlu0 12
        %1117 = vperm.xlu0 %1116, %v921
        %v1118 = vpop.permute.xlu0 %1117
        %v1120 = vlaneseq
        %v1121 = vshrl.u32 %v1120, 7
        %v1122 = vsub.s32 4, %v1121
        %v1123 = vrot.slane %v919, %v1122
        %v1124 = vlaneseq
        %v1125 = vshrl.u32 %v1124, 7
        %v1126 = vsub.s32 4, %v1125
        %v1127 = vrot.slane %v920, %v1126
        %v1128 = vmul.f32 %v1118, %v1123
        %v1129 = vmul.f32 %v1118, %v1127
        %v1130 = vadd.f32 %v1114, %v1128
        %v1131 = vadd.f32 %v1115, %v1129
        %1132 = vset.pattern.permute.xlu0 13
        %1133 = vperm.xlu0 %1132, %v921
        %v1134 = vpop.permute.xlu0 %1133
        %v1136 = vlaneseq
        %v1137 = vshrl.u32 %v1136, 7
        %v1138 = vsub.s32 5, %v1137
        %v1139 = vrot.slane %v919, %v1138
        %v1140 = vlaneseq
        %v1141 = vshrl.u32 %v1140, 7
        %v1142 = vsub.s32 5, %v1141
        %v1143 = vrot.slane %v920, %v1142
        %v1144 = vmul.f32 %v1134, %v1139
        %v1145 = vmul.f32 %v1134, %v1143
        %v1146 = vadd.f32 %v1130, %v1144
        %v1147 = vadd.f32 %v1131, %v1145
        %1148 = vset.pattern.permute.xlu0 14
        %1149 = vperm.xlu0 %1148, %v921
        %v1150 = vpop.permute.xlu0 %1149
        %v1152 = vlaneseq
        %v1153 = vshrl.u32 %v1152, 7
        %v1154 = vsub.s32 6, %v1153
        %v1155 = vrot.slane %v919, %v1154
        %v1156 = vlaneseq
        %v1157 = vshrl.u32 %v1156, 7
        %v1158 = vsub.s32 6, %v1157
        %v1159 = vrot.slane %v920, %v1158
        %v1160 = vmul.f32 %v1150, %v1155
        %v1161 = vmul.f32 %v1150, %v1159
        %v1162 = vadd.f32 %v1146, %v1160
        %v1163 = vadd.f32 %v1147, %v1161
        %1164 = vset.pattern.permute.xlu0 15
        %1165 = vperm.xlu0 %1164, %v921
        %v1166 = vpop.permute.xlu0 %1165
        %v1168 = vlaneseq
        %v1169 = vshrl.u32 %v1168, 7
        %v1170 = vsub.s32 7, %v1169
        %v1171 = vrot.slane %v919, %v1170
        %v1172 = vlaneseq
        %v1173 = vshrl.u32 %v1172, 7
        %v1174 = vsub.s32 7, %v1173
        %v1175 = vrot.slane %v920, %v1174
        %v1176 = vmul.f32 %v1166, %v1171
        %v1177 = vmul.f32 %v1166, %v1175
        %v1178 = vadd.f32 %v1162, %v1176
        %v1179 = vadd.f32 %v1163, %v1177
        %1181 = vset.pattern.permute.xlu0 0
        %1182 = vperm.xlu0 %1181, %v922
        %v1183 = vpop.permute.xlu0 %1182
        %v1185 = vadd.f32 %v1178, %v1183
        %v1186 = vadd.f32 %v1179, %v1183
        %v1187 = vcombine.high %v277, %v277
        %v1189 = vadd.f32 %v1185, %v277
        %v1190 = vadd.f32 %v1186, %v1187
        %v1193 = vcombine.low %v1189, %v1190
        %1195 = vst [vmem:[%s271] sm:$0xff] %v1193
        %s1196 = sand.u32 %s181, 1
        %s1197 = scalar_lea.sflag [#allocation4], %s1196
        %s1198 = sand.u32 %s181, 1
        %s1199 = smul.addr %s1198, 8
        %s1200 = scalar_lea.vmem [#allocation3], %s1199
        // Predicated region
        $region49: #{tpu_custom_call.1} parent=47 // pred_check
          %p1201 = pneg %p191
        $region50: #{tpu_custom_call.1} parent=47 // pred_check_branch
          %1203 = sbr.rel (%p1201) target = $region52
        $region51: #{tpu_custom_call.1} parent=47 // pred_region
          %s1205 = ssub.s32 128, 128
          %1206 = vsyncadd %s1197, %s1205
          %s1207 = smul.addr %s21, 2
          %s1208 = smul.addr %s1207, 64
          %s1209 = scalar_lea.hbm %s7, %s1208
          %s1211 = sshll.u32 %s1200, 4
          %s1212 = int_to_ptr.vmem [resolvable:$true] %s1211
          %1214 = dma.vmem_to_hbm [thread:$0]  %s1212, 128, %s1209, %s1197
        $region52: #{tpu_custom_call.1} parent=47 // pred_fallthru
          _
      $region48: #{tpu_custom_call.1} parent=5 // pred_fallthru
        _
      %p1215 = scmp.le.s32.totalorder 2, %s16
      // Predicated region
      $region53: #{tpu_custom_call.1} parent=5 // pred_check
        %p1216 = pneg %p1215
      $region54: #{tpu_custom_call.1} parent=5 // pred_check_branch
        %1218 = sbr.rel (%p1216) target = $region56
      $region55: #{tpu_custom_call.1} parent=5 // pred_region
        %s1219 = ssub.s32 %s16, 2
        // Predicated region
        $region57: #{tpu_custom_call.1} parent=55 // pred_check
          %p1220 = pneg %p197
        $region58: #{tpu_custom_call.1} parent=55 // pred_check_branch
          %1222 = sbr.rel (%p1220) target = $region60
        $region59: #{tpu_custom_call.1} parent=55 // pred_region
          %s1223 = sand.u32 %s182, 1
          %s1224 = scalar_lea.sflag [#allocation4], %s1223
          %s1225 = sand.u32 %s182, 1
          %s1226 = smul.addr %s1225, 8
          %s1227 = scalar_lea.vmem [#allocation3], %s1226
          %1228 = dma.done %s1224, 128
        $region60: #{tpu_custom_call.1} parent=55 // pred_fallthru
          _
      $region56: #{tpu_custom_call.1} parent=5 // pred_fallthru
        _
    $region6: #{tpu_custom_call.1} parent=1 // loop_footer
      %s20 = sadd.s32 1, %s16
    $region7: #{tpu_custom_call.1} parent=1 // loop_footer_branch
      %15 = sbr.rel target = $region3
    $region8: #{tpu_custom_call.1} parent=1 // loop_exit
      _
    %1229 = vsyncpa [#allocation4], 1
    %s1230 = scalar_lea.sflag [#allocation4], 1
    %1231 = vsyncpa %s1230, 1

</llo_original>
